<compile_context>
chip_gen: v6e
topology: v6e:2x2x1
jax: 0.10.0
libtpu: 0.0.40
codegen_flags: <defaults>
</compile_context>

<pallas_src>
import functools
import math

import jax
import jax.numpy as jnp
from jax.experimental import pallas as pl
from jax.experimental.pallas import tpu as pltpu

LENGTH_VECTOR_ENCODING = 300


def _round_up(x, m):
    return ((x + m - 1) // m) * m


def lstm_tagger_kernel(num_tags, x_ref, wih_ref, whh_ref, b_ref, wout_ref,
                       bout_ref, out_ref, xproj_ref, hs_ref):
    """Single-call kernel: full-sequence LSTM + Linear + log_softmax."""
    T = x_ref.shape[0]
    Hp = hs_ref.shape[1]          # padded hidden dim (multiple of 128)

    # --- Hoisted input projection: one batched MXU matmul for all timesteps.
    #     (T, D_in)[bf16] @ (D_in, 4Hp)[bf16] -> (T, 4Hp)[f32], bias folded in.
    xproj_ref[...] = (jnp.dot(x_ref[...], wih_ref[...],
                              preferred_element_type=jnp.float32)
                      + b_ref[...])

    whh = whh_ref[...]            # (Hp, 4Hp) bf16, kept resident in vregs

    def step(t, carry):
        h, c = carry                                          # (1, Hp) f32
        gates = (xproj_ref[pl.ds(t, 1), :]
                 + jnp.dot(h.astype(jnp.bfloat16), whh,
                           preferred_element_type=jnp.float32))   # (1, 4Hp)
        # One full-vreg sigmoid + one tanh(g) + one tanh(c_new): 3 EUP pushes.
        sig = jax.nn.sigmoid(gates)
        i_g = sig[:, 0 * Hp:1 * Hp]
        f_g = sig[:, 1 * Hp:2 * Hp]
        o_g = sig[:, 3 * Hp:4 * Hp]
        g_g = jnp.tanh(gates[:, 2 * Hp:3 * Hp])
        c_new = f_g * c + i_g * g_g
        h_new = o_g * jnp.tanh(c_new)
        hs_ref[pl.ds(t, 1), :] = h_new          # full-lane (128) unmasked store
        return (h_new, c_new)

    h0 = jnp.zeros((1, Hp), jnp.float32)
    c0 = jnp.zeros((1, Hp), jnp.float32)
    # T is static -> fully unrolled so cross-step work can be overlapped.
    jax.lax.fori_loop(0, T, step, (h0, c0), unroll=True)

    # --- hidden2tag + log_softmax over the (padded) tag axis, one batched op.
    hs = hs_ref[...]                                               # (T, Hp) f32
    tag_space = (jnp.dot(hs.astype(jnp.bfloat16), wout_ref[...],
                         preferred_element_type=jnp.float32)
                 + bout_ref[...])                                  # (T, TAGS_P)
    # Mask padded tag lanes so they never win the max / contribute to the sum.
    lane = jax.lax.broadcasted_iota(jnp.int32, tag_space.shape, 1)
    masked = jnp.where(lane < num_tags, tag_space, jnp.float32(-1e30))
    m = jnp.max(masked, axis=1, keepdims=True)
    lse = m + jnp.log(jnp.sum(jnp.exp(masked - m), axis=1, keepdims=True))
    out_ref[...] = masked - lse


def lstm_tagger_forward(sentence, params, encoding_tensor=None):
    """JAX wrapper mirroring LSTMTaggerModel.forward (batch=1 sentence)."""
    embeds = params["embedding"][sentence]                   # (T, E) gather
    if encoding_tensor is not None:
        embeds = jnp.concatenate(
            [embeds, encoding_tensor.astype(embeds.dtype)], axis=1)
    embeds = embeds.astype(jnp.bfloat16)                     # MXU-native input

    T, D_in = embeds.shape
    Hp = params["w_hh_t"].shape[0]          # padded hidden dim
    TAGS_P = params["w_out_t"].shape[1]     # padded (lane-dense) tag dim
    num_tags = params["num_tags"]

    out_padded = pl.pallas_call(
        functools.partial(lstm_tagger_kernel, num_tags),
        out_shape=jax.ShapeDtypeStruct((T, TAGS_P), jnp.float32),
        grid=(1,),
        in_specs=[
            pl.BlockSpec((T, D_in), lambda i: (0, 0)),
            pl.BlockSpec((D_in, 4 * Hp), lambda i: (0, 0)),
            pl.BlockSpec((Hp, 4 * Hp), lambda i: (0, 0)),
            pl.BlockSpec((1, 4 * Hp), lambda i: (0, 0)),
            pl.BlockSpec((Hp, TAGS_P), lambda i: (0, 0)),
            pl.BlockSpec((1, TAGS_P), lambda i: (0, 0)),
        ],
        out_specs=pl.BlockSpec((T, TAGS_P), lambda i: (0, 0)),
        scratch_shapes=[
            pltpu.VMEM((T, 4 * Hp), jnp.float32),   # hoisted x-projection
            pltpu.VMEM((T, Hp), jnp.float32),       # collected hidden states
        ],
        compiler_params=pltpu.CompilerParams(
            dimension_semantics=("arbitrary",)),
    )(embeds, params["w_ih_t"], params["w_hh_t"], params["b"],
      params["w_out_t"], params["b_out"])

    return out_padded[:, :num_tags]                          # (T, TAGS)


def lstm_tagger_reference(sentence, params, encoding_tensor=None):
    """Pure-JAX reference using the same padded/bf16 math (for validation)."""
    embeds = params["embedding"][sentence]
    if encoding_tensor is not None:
        embeds = jnp.concatenate(
            [embeds, encoding_tensor.astype(embeds.dtype)], axis=1)
    x = embeds.astype(jnp.bfloat16)
    wih, whh, b = params["w_ih_t"], params["w_hh_t"], params["b"]
    wout, bout = params["w_out_t"], params["b_out"]
    Hp = whh.shape[0]

    xproj = jnp.dot(x, wih, preferred_element_type=jnp.float32) + b

    def step(carry, xp_t):
        h, c = carry
        gates = xp_t[None, :] + jnp.dot(h.astype(jnp.bfloat16), whh,
                                        preferred_element_type=jnp.float32)
        i_g = jax.nn.sigmoid(gates[:, 0 * Hp:1 * Hp])
        f_g = jax.nn.sigmoid(gates[:, 1 * Hp:2 * Hp])
        g_g = jnp.tanh(gates[:, 2 * Hp:3 * Hp])
        o_g = jax.nn.sigmoid(gates[:, 3 * Hp:4 * Hp])
        c_new = f_g * c + i_g * g_g
        h_new = o_g * jnp.tanh(c_new)
        return (h_new, c_new), h_new[0]

    h0 = jnp.zeros((1, Hp), jnp.float32)
    c0 = jnp.zeros((1, Hp), jnp.float32)
    _, hs = jax.lax.scan(step, (h0, c0), xproj)
    tag_space = (jnp.dot(hs.astype(jnp.bfloat16), wout,
                         preferred_element_type=jnp.float32) + bout)
    tag_space = tag_space[:, :params["num_tags"]]
    return jax.nn.log_softmax(tag_space, axis=1)


def init_params(key, vocab_size, embedding_dim, hidden_dim, tagset_size,
                char_encoding=False):
    """Synthetic parameters matching the nn.Module shapes, in kernel layout."""
    lstm_in = embedding_dim + (LENGTH_VECTOR_ENCODING if char_encoding else 0)
    H = hidden_dim
    Hp = _round_up(hidden_dim, 128)
    TAGS_P = _round_up(tagset_size, 128)
    ks = jax.random.split(key, 8)
    s = 1.0 / math.sqrt(hidden_dim)

    # nn.Embedding(vocab_size, embedding_dim): N(0, 1)
    embedding = jax.random.normal(ks[0], (vocab_size, embedding_dim),
                                  jnp.float32)

    # nn.LSTM(lstm_in, hidden_dim): U(-1/sqrt(H), 1/sqrt(H)), gate order [i,f,g,o]
    w_ih = jax.random.uniform(ks[1], (4 * H, lstm_in), jnp.float32, -s, s)
    w_hh = jax.random.uniform(ks[2], (4 * H, H), jnp.float32, -s, s)
    b_ih = jax.random.uniform(ks[3], (4 * H,), jnp.float32, -s, s)
    b_hh = jax.random.uniform(ks[4], (4 * H,), jnp.float32, -s, s)

    # nn.Linear(hidden_dim, tagset_size)
    w_out = jax.random.uniform(ks[5], (tagset_size, H), jnp.float32, -s, s)
    b_out = jax.random.uniform(ks[6], (tagset_size,), jnp.float32, -s, s)

    def pad_gate_weight(w, in_dim, in_pad):
        # w: (4H, in_dim) PyTorch layout -> transposed, per-gate lane-padded
        # (in_pad, 4*Hp); gate order preserved, padding lanes are zero.
        blocks = []
        for k in range(4):
            blk = w[k * H:(k + 1) * H, :].T                       # (in_dim, H)
            blk = jnp.pad(blk, ((0, in_pad - in_dim), (0, Hp - H)))
            blocks.append(blk)
        return jnp.concatenate(blocks, axis=1)                    # (in_pad, 4Hp)

    def pad_gate_bias(bv):
        blocks = [jnp.pad(bv[k * H:(k + 1) * H], (0, Hp - H)) for k in range(4)]
        return jnp.concatenate(blocks).reshape(1, 4 * Hp)

    w_ih_t = pad_gate_weight(w_ih, lstm_in, lstm_in).astype(jnp.bfloat16)
    w_hh_t = pad_gate_weight(w_hh, H, Hp).astype(jnp.bfloat16)
    b = pad_gate_bias(b_ih + b_hh)                                # f32 (1, 4Hp)

    w_out_t = jnp.pad(w_out.T, ((0, Hp - H), (0, TAGS_P - tagset_size))
                      ).astype(jnp.bfloat16)                      # (Hp, TAGS_P)
    b_out_p = jnp.pad(b_out, (0, TAGS_P - tagset_size)
                      ).reshape(1, TAGS_P)                        # f32

    return {
        "embedding": embedding,
        "w_ih_t": w_ih_t,
        "w_hh_t": w_hh_t,
        "b": b,
        "w_out_t": w_out_t,
        "b_out": b_out_p,
        "num_tags": tagset_size,
    }


if __name__ == "__main__":
    # Small shapes consistent with the module's forward (batch=1 sequence).
    SEQ_LEN = 8
    VOCAB_SIZE = 50
    EMBEDDING_DIM = 32
    HIDDEN_DIM = 32
    TAGSET_SIZE = 5
    CHAR_ENCODING = False   # encoding_tensor=None path

    key = jax.random.PRNGKey(0)
    pkey, skey = jax.random.split(key)
    params = init_params(pkey, VOCAB_SIZE, EMBEDDING_DIM, HIDDEN_DIM,
                         TAGSET_SIZE, char_encoding=CHAR_ENCODING)
    sentence = jax.random.randint(skey, (SEQ_LEN,), 0, VOCAB_SIZE,
                                  dtype=jnp.int32)

    tag_scores = lstm_tagger_forward(sentence, params, encoding_tensor=None)
    tag_scores = jax.block_until_ready(tag_scores)

    assert tag_scores.shape == (SEQ_LEN, TAGSET_SIZE)
    # log_softmax rows should exponentiate-and-sum to ~1.
    row_sums = jnp.sum(jnp.exp(tag_scores), axis=1)
    assert bool(jnp.all(jnp.abs(row_sums - 1.0) < 1e-4))
    # Cross-check against a pure-JAX reference with the same bf16/padded math.
    ref = jax.block_until_ready(
        lstm_tagger_reference(sentence, params, encoding_tensor=None))
    assert bool(jnp.all(jnp.abs(tag_scores - ref) < 2e-2))

    print("KERNEL_OK")
</pallas_src>

<mosaic_0001>
module attributes {stable_mosaic.version = 11 : i64} {
  func.func @lstm_tagger_kernel(%arg0: i32, %arg1: memref<8x32xbf16, #tpu.memory_space<vmem>>, %arg2: memref<32x512xbf16, #tpu.memory_space<vmem>>, %arg3: memref<128x512xbf16, #tpu.memory_space<vmem>>, %arg4: memref<1x512xf32, #tpu.memory_space<vmem>>, %arg5: memref<128x128xbf16, #tpu.memory_space<vmem>>, %arg6: memref<1x128xf32, #tpu.memory_space<vmem>>, %arg7: memref<8x128xf32, #tpu.memory_space<vmem>>, %arg8: memref<8x512xf32, #tpu.memory_space<vmem>>, %arg9: memref<8x128xf32, #tpu.memory_space<vmem>>) attributes {dimension_semantics = [#tpu.dimension_semantics<arbitrary>], iteration_bounds = array<i64: 1>, scalar_prefetch = 0 : i64, scratch_operands = 2 : i64, tpu.core_type = #tpu.core_type<tc>, window_params = [{pipeline_mode = #tpu.pipeline_mode<synchronous>, transform_indices = @transform_0, window_bounds = array<i64: 8, 32>}, {pipeline_mode = #tpu.pipeline_mode<synchronous>, transform_indices = @transform_1, window_bounds = array<i64: 32, 512>}, {pipeline_mode = #tpu.pipeline_mode<synchronous>, transform_indices = @transform_2, window_bounds = array<i64: 128, 512>}, {pipeline_mode = #tpu.pipeline_mode<synchronous>, transform_indices = @transform_3, window_bounds = array<i64: 1, 512>}, {pipeline_mode = #tpu.pipeline_mode<synchronous>, transform_indices = @transform_4, window_bounds = array<i64: 128, 128>}, {pipeline_mode = #tpu.pipeline_mode<synchronous>, transform_indices = @transform_5, window_bounds = array<i64: 1, 128>}, {pipeline_mode = #tpu.pipeline_mode<synchronous>, transform_indices = @transform_6, window_bounds = array<i64: 8, 128>}]} {
    %c0 = arith.constant 0 : index
    %c0_0 = arith.constant 0 : index
    %0 = vector.load %arg1[%c0, %c0_0] : memref<8x32xbf16, #tpu.memory_space<vmem>>, vector<8x32xbf16>
    %c0_1 = arith.constant 0 : index
    %c0_2 = arith.constant 0 : index
    %1 = vector.load %arg2[%c0_1, %c0_2] : memref<32x512xbf16, #tpu.memory_space<vmem>>, vector<32x512xbf16>
    %cst = arith.constant dense<0.000000e+00> : vector<8x512xf32>
    %2 = tpu.matmul %0, %1, %cst {dimension_numbers = #tpu.dot_dimension_numbers<[1], [0], [0], [1], [0, 0, 1, 1], [], []>} : vector<8x32xbf16>, vector<32x512xbf16>, vector<8x512xf32> -> vector<8x512xf32>
    %c0_3 = arith.constant 0 : index
    %c0_4 = arith.constant 0 : index
    %3 = vector.load %arg4[%c0_3, %c0_4] : memref<1x512xf32, #tpu.memory_space<vmem>>, vector<1x512xf32>
    %4 = vector.broadcast %3 : vector<1x512xf32> to vector<8x512xf32>
    %5 = arith.addf %2, %4 : vector<8x512xf32>
    %c0_5 = arith.constant 0 : index
    %c0_6 = arith.constant 0 : index
    %6 = vector.load %arg8[%c0_5, %c0_6] : memref<8x512xf32, #tpu.memory_space<vmem>>, vector<8x512xf32>
    tpu.vector_store %arg8[%c0_5, %c0_6], %5 {strides = array<i32>} : memref<8x512xf32, #tpu.memory_space<vmem>>, vector<8x512xf32>,
    %c0_7 = arith.constant 0 : index
    %c0_8 = arith.constant 0 : index
    %7 = vector.load %arg3[%c0_7, %c0_8] : memref<128x512xbf16, #tpu.memory_space<vmem>>, vector<128x512xbf16>
    %cst_9 = arith.constant 0.000000e+00 : f32
    %8 = vector.broadcast %cst_9 : f32 to vector<1x128xf32>
    %cst_10 = arith.constant 0.000000e+00 : f32
    %9 = vector.broadcast %cst_10 : f32 to vector<1x128xf32>
    %c0_i32 = arith.constant 0 : i32
    %10 = arith.index_cast %c0_i32 : i32 to index
    %c0_11 = arith.constant 0 : index
    %11 = vector.load %arg8[%10, %c0_11] : memref<8x512xf32, #tpu.memory_space<vmem>>, vector<1x512xf32>
    %12 = arith.truncf %8 : vector<1x128xf32> to vector<1x128xbf16>
    %cst_12 = arith.constant dense<0.000000e+00> : vector<1x512xf32>
    %13 = tpu.matmul %12, %7, %cst_12 {dimension_numbers = #tpu.dot_dimension_numbers<[1], [0], [0], [1], [0, 0, 1, 1], [], []>} : vector<1x128xbf16>, vector<128x512xbf16>, vector<1x512xf32> -> vector<1x512xf32>
    %14 = arith.addf %11, %13 : vector<1x512xf32>
    %15 = arith.negf %14 : vector<1x512xf32>
    %16 = math.exp %15 : vector<1x512xf32>
    %cst_13 = arith.constant 1.000000e+00 : f32
    %17 = vector.broadcast %cst_13 : f32 to vector<1x512xf32>
    %18 = arith.addf %17, %16 : vector<1x512xf32>
    %19 = arith.divf %17, %18 : vector<1x512xf32>
    %20 = vector.extract_strided_slice %19 {offsets = [0, 0], sizes = [1, 128], strides = [1, 1]} : vector<1x512xf32> to vector<1x128xf32>
    %21 = vector.extract_strided_slice %19 {offsets = [0, 128], sizes = [1, 128], strides = [1, 1]} : vector<1x512xf32> to vector<1x128xf32>
    %22 = vector.extract_strided_slice %19 {offsets = [0, 384], sizes = [1, 128], strides = [1, 1]} : vector<1x512xf32> to vector<1x128xf32>
    %23 = vector.extract_strided_slice %14 {offsets = [0, 256], sizes = [1, 128], strides = [1, 1]} : vector<1x512xf32> to vector<1x128xf32>
    %24 = math.tanh %23 : vector<1x128xf32>
    %25 = arith.mulf %21, %9 : vector<1x128xf32>
    %26 = arith.mulf %20, %24 : vector<1x128xf32>
    %27 = arith.addf %25, %26 : vector<1x128xf32>
    %28 = math.tanh %27 : vector<1x128xf32>
    %29 = arith.mulf %22, %28 : vector<1x128xf32>
    %30 = arith.index_cast %c0_i32 : i32 to index
    %c0_14 = arith.constant 0 : index
    %31 = vector.load %arg9[%30, %c0_14] : memref<8x128xf32, #tpu.memory_space<vmem>>, vector<1x128xf32>
    tpu.vector_store %arg9[%30, %c0_14], %29 {strides = array<i32>} : memref<8x128xf32, #tpu.memory_space<vmem>>, vector<1x128xf32>,
    %c1_i32 = arith.constant 1 : i32
    %32 = arith.index_cast %c1_i32 : i32 to index
    %c0_15 = arith.constant 0 : index
    %33 = vector.load %arg8[%32, %c0_15] : memref<8x512xf32, #tpu.memory_space<vmem>>, vector<1x512xf32>
    %34 = arith.truncf %29 : vector<1x128xf32> to vector<1x128xbf16>
    %cst_16 = arith.constant dense<0.000000e+00> : vector<1x512xf32>
    %35 = tpu.matmul %34, %7, %cst_16 {dimension_numbers = #tpu.dot_dimension_numbers<[1], [0], [0], [1], [0, 0, 1, 1], [], []>} : vector<1x128xbf16>, vector<128x512xbf16>, vector<1x512xf32> -> vector<1x512xf32>
    %36 = arith.addf %33, %35 : vector<1x512xf32>
    %37 = arith.negf %36 : vector<1x512xf32>
    %38 = math.exp %37 : vector<1x512xf32>
    %cst_17 = arith.constant 1.000000e+00 : f32
    %39 = vector.broadcast %cst_17 : f32 to vector<1x512xf32>
    %40 = arith.addf %39, %38 : vector<1x512xf32>
    %41 = arith.divf %39, %40 : vector<1x512xf32>
    %42 = vector.extract_strided_slice %41 {offsets = [0, 0], sizes = [1, 128], strides = [1, 1]} : vector<1x512xf32> to vector<1x128xf32>
    %43 = vector.extract_strided_slice %41 {offsets = [0, 128], sizes = [1, 128], strides = [1, 1]} : vector<1x512xf32> to vector<1x128xf32>
    %44 = vector.extract_strided_slice %41 {offsets = [0, 384], sizes = [1, 128], strides = [1, 1]} : vector<1x512xf32> to vector<1x128xf32>
    %45 = vector.extract_strided_slice %36 {offsets = [0, 256], sizes = [1, 128], strides = [1, 1]} : vector<1x512xf32> to vector<1x128xf32>
    %46 = math.tanh %45 : vector<1x128xf32>
    %47 = arith.mulf %43, %27 : vector<1x128xf32>
    %48 = arith.mulf %42, %46 : vector<1x128xf32>
    %49 = arith.addf %47, %48 : vector<1x128xf32>
    %50 = math.tanh %49 : vector<1x128xf32>
    %51 = arith.mulf %44, %50 : vector<1x128xf32>
    %52 = arith.index_cast %c1_i32 : i32 to index
    %c0_18 = arith.constant 0 : index
    %53 = vector.load %arg9[%52, %c0_18] : memref<8x128xf32, #tpu.memory_space<vmem>>, vector<1x128xf32>
    tpu.vector_store %arg9[%52, %c0_18], %51 {strides = array<i32>} : memref<8x128xf32, #tpu.memory_space<vmem>>, vector<1x128xf32>,
    %c2_i32 = arith.constant 2 : i32
    %54 = arith.index_cast %c2_i32 : i32 to index
    %c0_19 = arith.constant 0 : index
    %55 = vector.load %arg8[%54, %c0_19] : memref<8x512xf32, #tpu.memory_space<vmem>>, vector<1x512xf32>
    %56 = arith.truncf %51 : vector<1x128xf32> to vector<1x128xbf16>
    %cst_20 = arith.constant dense<0.000000e+00> : vector<1x512xf32>
    %57 = tpu.matmul %56, %7, %cst_20 {dimension_numbers = #tpu.dot_dimension_numbers<[1], [0], [0], [1], [0, 0, 1, 1], [], []>} : vector<1x128xbf16>, vector<128x512xbf16>, vector<1x512xf32> -> vector<1x512xf32>
    %58 = arith.addf %55, %57 : vector<1x512xf32>
    %59 = arith.negf %58 : vector<1x512xf32>
    %60 = math.exp %59 : vector<1x512xf32>
    %cst_21 = arith.constant 1.000000e+00 : f32
    %61 = vector.broadcast %cst_21 : f32 to vector<1x512xf32>
    %62 = arith.addf %61, %60 : vector<1x512xf32>
    %63 = arith.divf %61, %62 : vector<1x512xf32>
    %64 = vector.extract_strided_slice %63 {offsets = [0, 0], sizes = [1, 128], strides = [1, 1]} : vector<1x512xf32> to vector<1x128xf32>
    %65 = vector.extract_strided_slice %63 {offsets = [0, 128], sizes = [1, 128], strides = [1, 1]} : vector<1x512xf32> to vector<1x128xf32>
    %66 = vector.extract_strided_slice %63 {offsets = [0, 384], sizes = [1, 128], strides = [1, 1]} : vector<1x512xf32> to vector<1x128xf32>
    %67 = vector.extract_strided_slice %58 {offsets = [0, 256], sizes = [1, 128], strides = [1, 1]} : vector<1x512xf32> to vector<1x128xf32>
    %68 = math.tanh %67 : vector<1x128xf32>
    %69 = arith.mulf %65, %49 : vector<1x128xf32>
    %70 = arith.mulf %64, %68 : vector<1x128xf32>
    %71 = arith.addf %69, %70 : vector<1x128xf32>
    %72 = math.tanh %71 : vector<1x128xf32>
    %73 = arith.mulf %66, %72 : vector<1x128xf32>
    %74 = arith.index_cast %c2_i32 : i32 to index
    %c0_22 = arith.constant 0 : index
    %75 = vector.load %arg9[%74, %c0_22] : memref<8x128xf32, #tpu.memory_space<vmem>>, vector<1x128xf32>
    tpu.vector_store %arg9[%74, %c0_22], %73 {strides = array<i32>} : memref<8x128xf32, #tpu.memory_space<vmem>>, vector<1x128xf32>,
    %c3_i32 = arith.constant 3 : i32
    %76 = arith.index_cast %c3_i32 : i32 to index
    %c0_23 = arith.constant 0 : index
    %77 = vector.load %arg8[%76, %c0_23] : memref<8x512xf32, #tpu.memory_space<vmem>>, vector<1x512xf32>
    %78 = arith.truncf %73 : vector<1x128xf32> to vector<1x128xbf16>
    %cst_24 = arith.constant dense<0.000000e+00> : vector<1x512xf32>
    %79 = tpu.matmul %78, %7, %cst_24 {dimension_numbers = #tpu.dot_dimension_numbers<[1], [0], [0], [1], [0, 0, 1, 1], [], []>} : vector<1x128xbf16>, vector<128x512xbf16>, vector<1x512xf32> -> vector<1x512xf32>
    %80 = arith.addf %77, %79 : vector<1x512xf32>
    %81 = arith.negf %80 : vector<1x512xf32>
    %82 = math.exp %81 : vector<1x512xf32>
    %cst_25 = arith.constant 1.000000e+00 : f32
    %83 = vector.broadcast %cst_25 : f32 to vector<1x512xf32>
    %84 = arith.addf %83, %82 : vector<1x512xf32>
    %85 = arith.divf %83, %84 : vector<1x512xf32>
    %86 = vector.extract_strided_slice %85 {offsets = [0, 0], sizes = [1, 128], strides = [1, 1]} : vector<1x512xf32> to vector<1x128xf32>
    %87 = vector.extract_strided_slice %85 {offsets = [0, 128], sizes = [1, 128], strides = [1, 1]} : vector<1x512xf32> to vector<1x128xf32>
    %88 = vector.extract_strided_slice %85 {offsets = [0, 384], sizes = [1, 128], strides = [1, 1]} : vector<1x512xf32> to vector<1x128xf32>
    %89 = vector.extract_strided_slice %80 {offsets = [0, 256], sizes = [1, 128], strides = [1, 1]} : vector<1x512xf32> to vector<1x128xf32>
    %90 = math.tanh %89 : vector<1x128xf32>
    %91 = arith.mulf %87, %71 : vector<1x128xf32>
    %92 = arith.mulf %86, %90 : vector<1x128xf32>
    %93 = arith.addf %91, %92 : vector<1x128xf32>
    %94 = math.tanh %93 : vector<1x128xf32>
    %95 = arith.mulf %88, %94 : vector<1x128xf32>
    %96 = arith.index_cast %c3_i32 : i32 to index
    %c0_26 = arith.constant 0 : index
    %97 = vector.load %arg9[%96, %c0_26] : memref<8x128xf32, #tpu.memory_space<vmem>>, vector<1x128xf32>
    tpu.vector_store %arg9[%96, %c0_26], %95 {strides = array<i32>} : memref<8x128xf32, #tpu.memory_space<vmem>>, vector<1x128xf32>,
    %c4_i32 = arith.constant 4 : i32
    %98 = arith.index_cast %c4_i32 : i32 to index
    %c0_27 = arith.constant 0 : index
    %99 = vector.load %arg8[%98, %c0_27] : memref<8x512xf32, #tpu.memory_space<vmem>>, vector<1x512xf32>
    %100 = arith.truncf %95 : vector<1x128xf32> to vector<1x128xbf16>
    %cst_28 = arith.constant dense<0.000000e+00> : vector<1x512xf32>
    %101 = tpu.matmul %100, %7, %cst_28 {dimension_numbers = #tpu.dot_dimension_numbers<[1], [0], [0], [1], [0, 0, 1, 1], [], []>} : vector<1x128xbf16>, vector<128x512xbf16>, vector<1x512xf32> -> vector<1x512xf32>
    %102 = arith.addf %99, %101 : vector<1x512xf32>
    %103 = arith.negf %102 : vector<1x512xf32>
    %104 = math.exp %103 : vector<1x512xf32>
    %cst_29 = arith.constant 1.000000e+00 : f32
    %105 = vector.broadcast %cst_29 : f32 to vector<1x512xf32>
    %106 = arith.addf %105, %104 : vector<1x512xf32>
    %107 = arith.divf %105, %106 : vector<1x512xf32>
    %108 = vector.extract_strided_slice %107 {offsets = [0, 0], sizes = [1, 128], strides = [1, 1]} : vector<1x512xf32> to vector<1x128xf32>
    %109 = vector.extract_strided_slice %107 {offsets = [0, 128], sizes = [1, 128], strides = [1, 1]} : vector<1x512xf32> to vector<1x128xf32>
    %110 = vector.extract_strided_slice %107 {offsets = [0, 384], sizes = [1, 128], strides = [1, 1]} : vector<1x512xf32> to vector<1x128xf32>
    %111 = vector.extract_strided_slice %102 {offsets = [0, 256], sizes = [1, 128], strides = [1, 1]} : vector<1x512xf32> to vector<1x128xf32>
    %112 = math.tanh %111 : vector<1x128xf32>
    %113 = arith.mulf %109, %93 : vector<1x128xf32>
    %114 = arith.mulf %108, %112 : vector<1x128xf32>
    %115 = arith.addf %113, %114 : vector<1x128xf32>
    %116 = math.tanh %115 : vector<1x128xf32>
    %117 = arith.mulf %110, %116 : vector<1x128xf32>
    %118 = arith.index_cast %c4_i32 : i32 to index
    %c0_30 = arith.constant 0 : index
    %119 = vector.load %arg9[%118, %c0_30] : memref<8x128xf32, #tpu.memory_space<vmem>>, vector<1x128xf32>
    tpu.vector_store %arg9[%118, %c0_30], %117 {strides = array<i32>} : memref<8x128xf32, #tpu.memory_space<vmem>>, vector<1x128xf32>,
    %c5_i32 = arith.constant 5 : i32
    %120 = arith.index_cast %c5_i32 : i32 to index
    %c0_31 = arith.constant 0 : index
    %121 = vector.load %arg8[%120, %c0_31] : memref<8x512xf32, #tpu.memory_space<vmem>>, vector<1x512xf32>
    %122 = arith.truncf %117 : vector<1x128xf32> to vector<1x128xbf16>
    %cst_32 = arith.constant dense<0.000000e+00> : vector<1x512xf32>
    %123 = tpu.matmul %122, %7, %cst_32 {dimension_numbers = #tpu.dot_dimension_numbers<[1], [0], [0], [1], [0, 0, 1, 1], [], []>} : vector<1x128xbf16>, vector<128x512xbf16>, vector<1x512xf32> -> vector<1x512xf32>
    %124 = arith.addf %121, %123 : vector<1x512xf32>
    %125 = arith.negf %124 : vector<1x512xf32>
    %126 = math.exp %125 : vector<1x512xf32>
    %cst_33 = arith.constant 1.000000e+00 : f32
    %127 = vector.broadcast %cst_33 : f32 to vector<1x512xf32>
    %128 = arith.addf %127, %126 : vector<1x512xf32>
    %129 = arith.divf %127, %128 : vector<1x512xf32>
    %130 = vector.extract_strided_slice %129 {offsets = [0, 0], sizes = [1, 128], strides = [1, 1]} : vector<1x512xf32> to vector<1x128xf32>
    %131 = vector.extract_strided_slice %129 {offsets = [0, 128], sizes = [1, 128], strides = [1, 1]} : vector<1x512xf32> to vector<1x128xf32>
    %132 = vector.extract_strided_slice %129 {offsets = [0, 384], sizes = [1, 128], strides = [1, 1]} : vector<1x512xf32> to vector<1x128xf32>
    %133 = vector.extract_strided_slice %124 {offsets = [0, 256], sizes = [1, 128], strides = [1, 1]} : vector<1x512xf32> to vector<1x128xf32>
    %134 = math.tanh %133 : vector<1x128xf32>
    %135 = arith.mulf %131, %115 : vector<1x128xf32>
    %136 = arith.mulf %130, %134 : vector<1x128xf32>
    %137 = arith.addf %135, %136 : vector<1x128xf32>
    %138 = math.tanh %137 : vector<1x128xf32>
    %139 = arith.mulf %132, %138 : vector<1x128xf32>
    %140 = arith.index_cast %c5_i32 : i32 to index
    %c0_34 = arith.constant 0 : index
    %141 = vector.load %arg9[%140, %c0_34] : memref<8x128xf32, #tpu.memory_space<vmem>>, vector<1x128xf32>
    tpu.vector_store %arg9[%140, %c0_34], %139 {strides = array<i32>} : memref<8x128xf32, #tpu.memory_space<vmem>>, vector<1x128xf32>,
    %c6_i32 = arith.constant 6 : i32
    %142 = arith.index_cast %c6_i32 : i32 to index
    %c0_35 = arith.constant 0 : index
    %143 = vector.load %arg8[%142, %c0_35] : memref<8x512xf32, #tpu.memory_space<vmem>>, vector<1x512xf32>
    %144 = arith.truncf %139 : vector<1x128xf32> to vector<1x128xbf16>
    %cst_36 = arith.constant dense<0.000000e+00> : vector<1x512xf32>
    %145 = tpu.matmul %144, %7, %cst_36 {dimension_numbers = #tpu.dot_dimension_numbers<[1], [0], [0], [1], [0, 0, 1, 1], [], []>} : vector<1x128xbf16>, vector<128x512xbf16>, vector<1x512xf32> -> vector<1x512xf32>
    %146 = arith.addf %143, %145 : vector<1x512xf32>
    %147 = arith.negf %146 : vector<1x512xf32>
    %148 = math.exp %147 : vector<1x512xf32>
    %cst_37 = arith.constant 1.000000e+00 : f32
    %149 = vector.broadcast %cst_37 : f32 to vector<1x512xf32>
    %150 = arith.addf %149, %148 : vector<1x512xf32>
    %151 = arith.divf %149, %150 : vector<1x512xf32>
    %152 = vector.extract_strided_slice %151 {offsets = [0, 0], sizes = [1, 128], strides = [1, 1]} : vector<1x512xf32> to vector<1x128xf32>
    %153 = vector.extract_strided_slice %151 {offsets = [0, 128], sizes = [1, 128], strides = [1, 1]} : vector<1x512xf32> to vector<1x128xf32>
    %154 = vector.extract_strided_slice %151 {offsets = [0, 384], sizes = [1, 128], strides = [1, 1]} : vector<1x512xf32> to vector<1x128xf32>
    %155 = vector.extract_strided_slice %146 {offsets = [0, 256], sizes = [1, 128], strides = [1, 1]} : vector<1x512xf32> to vector<1x128xf32>
    %156 = math.tanh %155 : vector<1x128xf32>
    %157 = arith.mulf %153, %137 : vector<1x128xf32>
    %158 = arith.mulf %152, %156 : vector<1x128xf32>
    %159 = arith.addf %157, %158 : vector<1x128xf32>
    %160 = math.tanh %159 : vector<1x128xf32>
    %161 = arith.mulf %154, %160 : vector<1x128xf32>
    %162 = arith.index_cast %c6_i32 : i32 to index
    %c0_38 = arith.constant 0 : index
    %163 = vector.load %arg9[%162, %c0_38] : memref<8x128xf32, #tpu.memory_space<vmem>>, vector<1x128xf32>
    tpu.vector_store %arg9[%162, %c0_38], %161 {strides = array<i32>} : memref<8x128xf32, #tpu.memory_space<vmem>>, vector<1x128xf32>,
    %c7_i32 = arith.constant 7 : i32
    %164 = arith.index_cast %c7_i32 : i32 to index
    %c0_39 = arith.constant 0 : index
    %165 = vector.load %arg8[%164, %c0_39] : memref<8x512xf32, #tpu.memory_space<vmem>>, vector<1x512xf32>
    %166 = arith.truncf %161 : vector<1x128xf32> to vector<1x128xbf16>
    %cst_40 = arith.constant dense<0.000000e+00> : vector<1x512xf32>
    %167 = tpu.matmul %166, %7, %cst_40 {dimension_numbers = #tpu.dot_dimension_numbers<[1], [0], [0], [1], [0, 0, 1, 1], [], []>} : vector<1x128xbf16>, vector<128x512xbf16>, vector<1x512xf32> -> vector<1x512xf32>
    %168 = arith.addf %165, %167 : vector<1x512xf32>
    %169 = arith.negf %168 : vector<1x512xf32>
    %170 = math.exp %169 : vector<1x512xf32>
    %cst_41 = arith.constant 1.000000e+00 : f32
    %171 = vector.broadcast %cst_41 : f32 to vector<1x512xf32>
    %172 = arith.addf %171, %170 : vector<1x512xf32>
    %173 = arith.divf %171, %172 : vector<1x512xf32>
    %174 = vector.extract_strided_slice %173 {offsets = [0, 0], sizes = [1, 128], strides = [1, 1]} : vector<1x512xf32> to vector<1x128xf32>
    %175 = vector.extract_strided_slice %173 {offsets = [0, 128], sizes = [1, 128], strides = [1, 1]} : vector<1x512xf32> to vector<1x128xf32>
    %176 = vector.extract_strided_slice %173 {offsets = [0, 384], sizes = [1, 128], strides = [1, 1]} : vector<1x512xf32> to vector<1x128xf32>
    %177 = vector.extract_strided_slice %168 {offsets = [0, 256], sizes = [1, 128], strides = [1, 1]} : vector<1x512xf32> to vector<1x128xf32>
    %178 = math.tanh %177 : vector<1x128xf32>
    %179 = arith.mulf %175, %159 : vector<1x128xf32>
    %180 = arith.mulf %174, %178 : vector<1x128xf32>
    %181 = arith.addf %179, %180 : vector<1x128xf32>
    %182 = math.tanh %181 : vector<1x128xf32>
    %183 = arith.mulf %176, %182 : vector<1x128xf32>
    %184 = arith.index_cast %c7_i32 : i32 to index
    %c0_42 = arith.constant 0 : index
    %185 = vector.load %arg9[%184, %c0_42] : memref<8x128xf32, #tpu.memory_space<vmem>>, vector<1x128xf32>
    tpu.vector_store %arg9[%184, %c0_42], %183 {strides = array<i32>} : memref<8x128xf32, #tpu.memory_space<vmem>>, vector<1x128xf32>,
    %c8_i32 = arith.constant 8 : i32
    %c0_43 = arith.constant 0 : index
    %c0_44 = arith.constant 0 : index
    %186 = vector.load %arg9[%c0_43, %c0_44] : memref<8x128xf32, #tpu.memory_space<vmem>>, vector<8x128xf32>
    %187 = arith.truncf %186 : vector<8x128xf32> to vector<8x128xbf16>
    %c0_45 = arith.constant 0 : index
    %c0_46 = arith.constant 0 : index
    %188 = vector.load %arg5[%c0_45, %c0_46] : memref<128x128xbf16, #tpu.memory_space<vmem>>, vector<128x128xbf16>
    %cst_47 = arith.constant dense<0.000000e+00> : vector<8x128xf32>
    %189 = tpu.matmul %187, %188, %cst_47 {dimension_numbers = #tpu.dot_dimension_numbers<[1], [0], [0], [1], [0, 0, 1, 1], [], []>} : vector<8x128xbf16>, vector<128x128xbf16>, vector<8x128xf32> -> vector<8x128xf32>
    %c0_48 = arith.constant 0 : index
    %c0_49 = arith.constant 0 : index
    %190 = vector.load %arg6[%c0_48, %c0_49] : memref<1x128xf32, #tpu.memory_space<vmem>>, vector<1x128xf32>
    %191 = vector.broadcast %190 : vector<1x128xf32> to vector<8x128xf32>
    %192 = arith.addf %189, %191 : vector<8x128xf32>
    %193 = tpu.iota {dimensions = array<i32: 1>} : vector<8x128xi32>
    %c5_i32_50 = arith.constant 5 : i32
    %194 = vector.broadcast %c5_i32_50 : i32 to vector<8x128xi32>
    %195 = arith.cmpi slt, %193, %194 : vector<8x128xi32>
    %cst_51 = arith.constant -1.000000e+30 : f32
    %196 = vector.broadcast %cst_51 : f32 to vector<8x128xf32>
    %197 = arith.select %195, %192, %196 : vector<8x128xi1>, vector<8x128xf32>
    %cst_52 = arith.constant dense<0xFF800000> : vector<8xf32>
    %198 = vector.multi_reduction <maximumf>, %197, %cst_52 [1] : vector<8x128xf32> to vector<8xf32>
    %199 = vector.shape_cast %198 : vector<8xf32> to vector<8x1xf32>
    %200 = vector.broadcast %199 : vector<8x1xf32> to vector<8x128xf32>
    %201 = arith.subf %197, %200 : vector<8x128xf32>
    %202 = math.exp %201 : vector<8x128xf32>
    %cst_53 = arith.constant dense<0.000000e+00> : vector<8xf32>
    %203 = vector.multi_reduction <add>, %202, %cst_53 [1] : vector<8x128xf32> to vector<8xf32>
    %204 = vector.shape_cast %203 : vector<8xf32> to vector<8x1xf32>
    %205 = math.log %204 : vector<8x1xf32>
    %206 = arith.addf %199, %205 : vector<8x1xf32>
    %207 = vector.broadcast %206 : vector<8x1xf32> to vector<8x128xf32>
    %208 = arith.subf %197, %207 : vector<8x128xf32>
    %c0_54 = arith.constant 0 : index
    %c0_55 = arith.constant 0 : index
    %209 = vector.load %arg7[%c0_54, %c0_55] : memref<8x128xf32, #tpu.memory_space<vmem>>, vector<8x128xf32>
    tpu.vector_store %arg7[%c0_54, %c0_55], %208 {strides = array<i32>} : memref<8x128xf32, #tpu.memory_space<vmem>>, vector<8x128xf32>,
    return
  }
  func.func @transform_0(%arg0: i32) -> (i32, i32) {
    %c0_i32 = arith.constant 0 : i32
    %c0_i32_0 = arith.constant 0 : i32
    %c0_i32_1 = arith.constant 0 : i32
    return %c0_i32, %c0_i32_0 : i32, i32
  }
  func.func @transform_1(%arg0: i32) -> (i32, i32) {
    %c0_i32 = arith.constant 0 : i32
    %c0_i32_0 = arith.constant 0 : i32
    %c0_i32_1 = arith.constant 0 : i32
    return %c0_i32, %c0_i32_0 : i32, i32
  }
  func.func @transform_2(%arg0: i32) -> (i32, i32) {
    %c0_i32 = arith.constant 0 : i32
    %c0_i32_0 = arith.constant 0 : i32
    %c0_i32_1 = arith.constant 0 : i32
    return %c0_i32, %c0_i32_0 : i32, i32
  }
  func.func @transform_3(%arg0: i32) -> (i32, i32) {
    %c0_i32 = arith.constant 0 : i32
    %c0_i32_0 = arith.constant 0 : i32
    %c0_i32_1 = arith.constant 0 : i32
    return %c0_i32, %c0_i32_0 : i32, i32
  }
  func.func @transform_4(%arg0: i32) -> (i32, i32) {
    %c0_i32 = arith.constant 0 : i32
    %c0_i32_0 = arith.constant 0 : i32
    %c0_i32_1 = arith.constant 0 : i32
    return %c0_i32, %c0_i32_0 : i32, i32
  }
  func.func @transform_5(%arg0: i32) -> (i32, i32) {
    %c0_i32 = arith.constant 0 : i32
    %c0_i32_0 = arith.constant 0 : i32
    %c0_i32_1 = arith.constant 0 : i32
    return %c0_i32, %c0_i32_0 : i32, i32
  }
  func.func @transform_6(%arg0: i32) -> (i32, i32) {
    %c0_i32 = arith.constant 0 : i32
    %c0_i32_0 = arith.constant 0 : i32
    %c0_i32_1 = arith.constant 0 : i32
    return %c0_i32, %c0_i32_0 : i32, i32
  }
}

</mosaic_0001>

<llo_original>
// kernel: tpu_custom_call.1
$region0: #{tpu_custom_call.1}
  #allocation0 [shape = 'u32[]', space=smem, size = 0x4, offset = 0x4, fixed_abs, tag = 'smem constant byte address 0x4 - core index']
  #allocation1 [shape = 'u32[144,128]{1,0:T(1,128)}', space=vmem, size = 0x12000, scoped, tag = 'internal scratch']
  #allocation2 [shape = 'f32[8,512]{1,0:T(8,128)}', space=vmem, size = 0x4000, scoped, tag = 'scratch operand']
  #allocation3 [shape = 'f32[8,128]{1,0:T(8,128)}', space=vmem, size = 0x1000, scoped, tag = 'scratch operand']
  %s0 = inlined_call_operand.hbm [shape: bf16[8,32], index: 0, kind: input, shape index: {}]
  %s1 = inlined_call_operand.hbm [shape: bf16[32,512], index: 1, kind: input, shape index: {}]
  %s2 = inlined_call_operand.hbm [shape: bf16[128,512], index: 2, kind: input, shape index: {}]
  %s3 = inlined_call_operand.vmem [shape: f32[1,512], index: 3, kind: input, shape index: {}]
  %s4 = inlined_call_operand.hbm [shape: bf16[128,128], index: 4, kind: input, shape index: {}]
  %s5 = inlined_call_operand.vmem [shape: f32[1,128], index: 5, kind: input, shape index: {}]
  %s6 = inlined_call_operand.hbm [shape: f32[8,128], index: 6, kind: output, shape index: {}]
  %s7 = sld [smem:[#allocation0]]
  $region50: #{tpu_custom_call.1} parent=0
    _
  %s9 = ssub.s32 1, %s7
  %s10 = scalar_select 0, %s9, %s7
  $region1: #{tpu_custom_call.1} parent=0
    #allocation4 [shape = 'u8[2048]{0}', space=vmem, size = 0x800, scoped, tag = 'input window, operand 0, single buffered']
    #allocation5 [shape = 's32[1]{0}', space=sflag, size = 0x4, scoped, tag = 'scoped memory for tpu_custom_call.1']
    #allocation6 [shape = 's32[1]{0}', space=sflag, size = 0x4, scoped, tag = 'scoped memory for tpu_custom_call.1']
    #allocation7 [shape = 'u8[32768]{0}', space=vmem, size = 0x8000, scoped, tag = 'input window, operand 1, single buffered']
    #allocation8 [shape = 's32[1]{0}', space=sflag, size = 0x4, scoped, tag = 'scoped memory for tpu_custom_call.1']
    #allocation9 [shape = 'u8[131072]{0}', space=vmem, size = 0x20000, scoped, tag = 'input window, operand 2, single buffered']
    #allocation10 [shape = 'u8[32768]{0}', space=vmem, size = 0x8000, scoped, tag = 'input window, operand 4, single buffered']
    #allocation11 [shape = 's32[1]{0}', space=sflag, size = 0x4, scoped, tag = 'scoped memory for tpu_custom_call.1']
    #allocation12 [shape = 'u8[4096]{0}', space=vmem, size = 0x1000, scoped, tag = 'output window, operand 0, single buffered']
    %11 = vsyncpa [#allocation5], 0
    %12 = vsyncpa [#allocation8], 0
    %13 = vsyncpa [#allocation11], 0
    %14 = vsyncpa [#allocation6], 0
    // Predicated region
    $region2: #{tpu_custom_call.1} parent=1 // pred_check
      _
    $region3: #{tpu_custom_call.1} parent=1 // pred_check_branch
      %16 = sbr.rel (0) target = $region5
    $region4: #{tpu_custom_call.1} parent=1 // pred_region
      %s18 = ssub.s32 64, 64
      %19 = vsyncadd [#allocation5], %s18
      %s21 = sshll.u32 [#allocation4], 4
      %s22 = int_to_ptr.vmem [resolvable:$true] %s21
      %24 = dma.hbm_to_vmem [thread:$0]  %s0, 64, %s22, [#allocation5]
    $region5: #{tpu_custom_call.1} parent=1 // pred_fallthru
      _
    // Predicated region
    $region6: #{tpu_custom_call.1} parent=1 // pred_check
      _
    $region7: #{tpu_custom_call.1} parent=1 // pred_check_branch
      %26 = sbr.rel (0) target = $region9
    $region8: #{tpu_custom_call.1} parent=1 // pred_region
      %s28 = ssub.s32 1024, 1024
      %29 = vsyncadd [#allocation8], %s28
      %s30 = sshll.u32 [#allocation7], 4
      %s31 = int_to_ptr.vmem [resolvable:$true] %s30
      %36 = dma.hbm_to_vmem [thread:$0]  %s1, 1024, %s31, [#allocation8], 256, 256, 16
    $region9: #{tpu_custom_call.1} parent=1 // pred_fallthru
      _
    // Predicated region
    $region10: #{tpu_custom_call.1} parent=1 // pred_check
      _
    $region11: #{tpu_custom_call.1} parent=1 // pred_check_branch
      %38 = sbr.rel (0) target = $region13
    $region12: #{tpu_custom_call.1} parent=1 // pred_region
      %s40 = ssub.s32 4096, 4096
      %41 = vsyncadd [#allocation8], %s40
      %s42 = sshll.u32 [#allocation9], 4
      %s43 = int_to_ptr.vmem [resolvable:$true] %s42
      %48 = dma.hbm_to_vmem [thread:$0]  %s2, 4096, %s43, [#allocation8], 256, 256, 16
    $region13: #{tpu_custom_call.1} parent=1 // pred_fallthru
      _
    // Predicated region
    $region14: #{tpu_custom_call.1} parent=1 // pred_check
      _
    $region15: #{tpu_custom_call.1} parent=1 // pred_check_branch
      %50 = sbr.rel (0) target = $region17
    $region16: #{tpu_custom_call.1} parent=1 // pred_region
      _
    $region17: #{tpu_custom_call.1} parent=1 // pred_fallthru
      _
    // Predicated region
    $region18: #{tpu_custom_call.1} parent=1 // pred_check
      _
    $region19: #{tpu_custom_call.1} parent=1 // pred_check_branch
      %52 = sbr.rel (0) target = $region21
    $region20: #{tpu_custom_call.1} parent=1 // pred_region
      %s54 = ssub.s32 1024, 1024
      %55 = vsyncadd [#allocation11], %s54
      %s56 = sshll.u32 [#allocation10], 4
      %s57 = int_to_ptr.vmem [resolvable:$true] %s56
      %62 = dma.hbm_to_vmem [thread:$0]  %s4, 1024, %s57, [#allocation11], 64, 64, 4
    $region21: #{tpu_custom_call.1} parent=1 // pred_fallthru
      _
    // Predicated region
    $region22: #{tpu_custom_call.1} parent=1 // pred_check
      _
    $region23: #{tpu_custom_call.1} parent=1 // pred_check_branch
      %64 = sbr.rel (0) target = $region25
    $region24: #{tpu_custom_call.1} parent=1 // pred_region
      _
    $region25: #{tpu_custom_call.1} parent=1 // pred_fallthru
      _
    // Predicated region
    $region26: #{tpu_custom_call.1} parent=1 // pred_check
      _
    $region27: #{tpu_custom_call.1} parent=1 // pred_check_branch
      %66 = sbr.rel (0) target = $region29
    $region28: #{tpu_custom_call.1} parent=1 // pred_region
      %67 = dma.done [#allocation5], 64
    $region29: #{tpu_custom_call.1} parent=1 // pred_fallthru
      _
    // Predicated region
    $region30: #{tpu_custom_call.1} parent=1 // pred_check
      _
    $region31: #{tpu_custom_call.1} parent=1 // pred_check_branch
      %69 = sbr.rel (0) target = $region33
    $region32: #{tpu_custom_call.1} parent=1 // pred_region
      %70 = dma.done [#allocation8], 1024
    $region33: #{tpu_custom_call.1} parent=1 // pred_fallthru
      _
    // Predicated region
    $region34: #{tpu_custom_call.1} parent=1 // pred_check
      _
    $region35: #{tpu_custom_call.1} parent=1 // pred_check_branch
      %72 = sbr.rel (0) target = $region37
    $region36: #{tpu_custom_call.1} parent=1 // pred_region
      %73 = dma.done [#allocation8], 4096
    $region37: #{tpu_custom_call.1} parent=1 // pred_fallthru
      _
    // Predicated region
    $region38: #{tpu_custom_call.1} parent=1 // pred_check
      _
    $region39: #{tpu_custom_call.1} parent=1 // pred_check_branch
      %75 = sbr.rel (0) target = $region41
    $region40: #{tpu_custom_call.1} parent=1 // pred_region
      %76 = dma.done [#allocation11], 1024
    $region41: #{tpu_custom_call.1} parent=1 // pred_fallthru
      _
    %v78 = vld [vmem:[#allocation4] sm:$0xf]
    %v79 = vld [vmem:[#allocation7] sm:$0xff]
    %v80 = vld [vmem:[#allocation7 + $0x8] sm:$0xff]
    %v81 = vld [vmem:[#allocation7 + $0x10] sm:$0xff]
    %v82 = vld [vmem:[#allocation7 + $0x18] sm:$0xff]
    %v83 = vld [vmem:[#allocation7 + $0x20] sm:$0xff]
    %v84 = vld [vmem:[#allocation7 + $0x28] sm:$0xff]
    %v85 = vld [vmem:[#allocation7 + $0x30] sm:$0xff]
    %v86 = vld [vmem:[#allocation7 + $0x38] sm:$0xff]
    %v87 = vld [vmem:[%s3] sm:$0xf]
    %v89 = vlaneseq
    %v90 = vshrl.u32 %v89, 7
    %v91 = vsub.s32 0, %v90
    %v92 = vrot.slane %v87, %v91
    %v93 = vlaneseq
    %v94 = vshrl.u32 %v93, 7
    %v95 = vsub.s32 1, %v94
    %v96 = vrot.slane %v87, %v95
    %v97 = vlaneseq
    %v98 = vshrl.u32 %v97, 7
    %v99 = vsub.s32 2, %v98
    %v100 = vrot.slane %v87, %v99
    %v101 = vlaneseq
    %v102 = vshrl.u32 %v101, 7
    %v103 = vsub.s32 3, %v102
    %v104 = vrot.slane %v87, %v103
    %v117 = vunpack.c.l.b16 %v79
    %v118 = vunpack.c.h.b16 %v79
    %v119 = vunpack.c.l.b16 %v80
    %v120 = vunpack.c.h.b16 %v80
    %v121 = vunpack.c.l.b16 %v81
    %v122 = vunpack.c.h.b16 %v81
    %v123 = vunpack.c.l.b16 %v82
    %v124 = vunpack.c.h.b16 %v82
    %v125 = vunpack.c.l.b16 %v83
    %v126 = vunpack.c.h.b16 %v83
    %v127 = vunpack.c.l.b16 %v84
    %v128 = vunpack.c.h.b16 %v84
    %v129 = vunpack.c.l.b16 %v85
    %v130 = vunpack.c.h.b16 %v85
    %v131 = vunpack.c.l.b16 %v86
    %v132 = vunpack.c.h.b16 %v86
    %v133 = vpack.c.b16 %v121, %v117
    %v134 = vpack.c.b16 %v122, %v118
    %v135 = vpack.c.b16 %v123, %v119
    %v136 = vpack.c.b16 %v124, %v120
    %v137 = vpack.c.b16 %v129, %v125
    %v138 = vpack.c.b16 %v130, %v126
    %v139 = vpack.c.b16 %v131, %v127
    %v140 = vpack.c.b16 %v132, %v128
    %vm149 = vcmask 261120
    %v151 = vsel %vm149, %v78, 0
    %153 = vmatprep.subr.bf16.mxu0 0
    %154 = vmatpush1.bf16.msra.mxu0 0
    %155 = vmatprep.subr.bf16.mxu0 0
    %156 = vmatpush1.bf16.msra.mxu0 0
    %157 = vmatprep.subr.bf16.mxu0 0
    %158 = vmatpush1.bf16.msra.mxu0 0
    %159 = vmatprep.subr.bf16.mxu0 0
    %160 = vmatpush1.bf16.msra.mxu0 0
    %161 = vmatprep.subr.bf16.mxu0 0
    %162 = vmatpush1.bf16.msra.mxu0 0
    %163 = vmatprep.subr.bf16.mxu0 0
    %164 = vmatpush1.bf16.msra.mxu0 0
    %165 = vmatprep.subr.bf16.mxu0 %v138
    %166 = vmatpush1.bf16.msra.mxu0 %v137
    %167 = vmatprep.subr.bf16.mxu0 %v134
    %168 = vmatpush1.bf16.msra.mxu0 %v133
    %169 = vmatprep.subr.bf16.mxu0 0
    %170 = vmatpush2.bf16.msra.mxu0 0
    %171 = vmatprep.subr.bf16.mxu0 0
    %172 = vmatpush2.bf16.msra.mxu0 0
    %173 = vmatprep.subr.bf16.mxu0 0
    %174 = vmatpush2.bf16.msra.mxu0 0
    %175 = vmatprep.subr.bf16.mxu0 0
    %176 = vmatpush2.bf16.msra.mxu0 0
    %177 = vmatprep.subr.bf16.mxu0 0
    %178 = vmatpush2.bf16.msra.mxu0 0
    %179 = vmatprep.subr.bf16.mxu0 0
    %180 = vmatpush2.bf16.msra.mxu0 0
    %181 = vmatprep.subr.bf16.mxu0 0
    %182 = vmatpush2.bf16.msra.mxu0 0
    %183 = vmatprep.subr.bf16.mxu0 0
    %184 = vmatpush2.bf16.msra.mxu0 0
    %185 = vmatprep.mubr.bf16.mxu0 0
    %186 = vmatmul.mubr.bf16.gmra.mxu0 %v151
    %v187 = vpop.f32.mrf.mxu0
    %v188 = vadd.f32 %v92, %v187
    %v189 = vpop.f32.mrf.mxu0
    %v190 = vadd.f32 %v96, %v189
    %v191 = vpop.f32.mrf.mxu0
    %v192 = vpop.f32.mrf.mxu0
    %193 = vdwg.mxu0
    %194 = vmatprep.subr.bf16.mxu0 0
    %195 = vmatpush1.bf16.msra.mxu0 0
    %196 = vmatprep.subr.bf16.mxu0 0
    %197 = vmatpush1.bf16.msra.mxu0 0
    %198 = vmatprep.subr.bf16.mxu0 0
    %199 = vmatpush1.bf16.msra.mxu0 0
    %200 = vmatprep.subr.bf16.mxu0 0
    %201 = vmatpush1.bf16.msra.mxu0 0
    %202 = vmatprep.subr.bf16.mxu0 0
    %203 = vmatpush1.bf16.msra.mxu0 0
    %204 = vmatprep.subr.bf16.mxu0 0
    %205 = vmatpush1.bf16.msra.mxu0 0
    %206 = vmatprep.subr.bf16.mxu0 %v140
    %207 = vmatpush1.bf16.msra.mxu0 %v139
    %208 = vmatprep.subr.bf16.mxu0 %v136
    %209 = vmatpush1.bf16.msra.mxu0 %v135
    %210 = vmatprep.subr.bf16.mxu0 0
    %211 = vmatpush2.bf16.msra.mxu0 0
    %212 = vmatprep.subr.bf16.mxu0 0
    %213 = vmatpush2.bf16.msra.mxu0 0
    %214 = vmatprep.subr.bf16.mxu0 0
    %215 = vmatpush2.bf16.msra.mxu0 0
    %216 = vmatprep.subr.bf16.mxu0 0
    %217 = vmatpush2.bf16.msra.mxu0 0
    %218 = vmatprep.subr.bf16.mxu0 0
    %219 = vmatpush2.bf16.msra.mxu0 0
    %220 = vmatprep.subr.bf16.mxu0 0
    %221 = vmatpush2.bf16.msra.mxu0 0
    %222 = vmatprep.subr.bf16.mxu0 0
    %223 = vmatpush2.bf16.msra.mxu0 0
    %224 = vmatprep.subr.bf16.mxu0 0
    %225 = vmatpush2.bf16.msra.mxu0 0
    %226 = vmatprep.mubr.bf16.mxu0 0
    %227 = vmatmul.mubr.bf16.gmra.mxu0 %v151
    %v228 = vpop.f32.mrf.mxu0
    %v229 = vadd.f32 %v100, %v228
    %v230 = vpop.f32.mrf.mxu0
    %v231 = vadd.f32 %v104, %v230
    %v232 = vpop.f32.mrf.mxu0
    %v233 = vpop.f32.mrf.mxu0
    %234 = vdwg.mxu0
    %235 = vst [vmem:[#allocation2] sm:$0xff] %v188
    %236 = vst [vmem:[#allocation2 + $0x8] sm:$0xff] %v190
    %237 = vst [vmem:[#allocation2 + $0x10] sm:$0xff] %v229
    %238 = vst [vmem:[#allocation2 + $0x18] sm:$0xff] %v231
    %v239 = vld [vmem:[#allocation9] sm:$0xff]
    %v240 = vld [vmem:[#allocation9 + $0x8] sm:$0xff]
    %v241 = vld [vmem:[#allocation9 + $0x10] sm:$0xff]
    %v242 = vld [vmem:[#allocation9 + $0x18] sm:$0xff]
    %v243 = vld [vmem:[#allocation9 + $0x20] sm:$0xff]
    %v244 = vld [vmem:[#allocation9 + $0x28] sm:$0xff]
    %v245 = vld [vmem:[#allocation9 + $0x30] sm:$0xff]
    %v246 = vld [vmem:[#allocation9 + $0x38] sm:$0xff]
    %v247 = vld [vmem:[#allocation9 + $0x40] sm:$0xff]
    %v248 = vld [vmem:[#allocation9 + $0x48] sm:$0xff]
    %v249 = vld [vmem:[#allocation9 + $0x50] sm:$0xff]
    %v250 = vld [vmem:[#allocation9 + $0x58] sm:$0xff]
    %v251 = vld [vmem:[#allocation9 + $0x60] sm:$0xff]
    %v252 = vld [vmem:[#allocation9 + $0x68] sm:$0xff]
    %v253 = vld [vmem:[#allocation9 + $0x70] sm:$0xff]
    %v254 = vld [vmem:[#allocation9 + $0x78] sm:$0xff]
    %v255 = vld [vmem:[#allocation9 + $0x80] sm:$0xff]
    %v256 = vld [vmem:[#allocation9 + $0x88] sm:$0xff]
    %v257 = vld [vmem:[#allocation9 + $0x90] sm:$0xff]
    %v258 = vld [vmem:[#allocation9 + $0x98] sm:$0xff]
    %v259 = vld [vmem:[#allocation9 + $0xa0] sm:$0xff]
    %v260 = vld [vmem:[#allocation9 + $0xa8] sm:$0xff]
    %v261 = vld [vmem:[#allocation9 + $0xb0] sm:$0xff]
    %v262 = vld [vmem:[#allocation9 + $0xb8] sm:$0xff]
    %v263 = vld [vmem:[#allocation9 + $0xc0] sm:$0xff]
    %v264 = vld [vmem:[#allocation9 + $0xc8] sm:$0xff]
    %v265 = vld [vmem:[#allocation9 + $0xd0] sm:$0xff]
    %v266 = vld [vmem:[#allocation9 + $0xd8] sm:$0xff]
    %v267 = vld [vmem:[#allocation9 + $0xe0] sm:$0xff]
    %v268 = vld [vmem:[#allocation9 + $0xe8] sm:$0xff]
    %v269 = vld [vmem:[#allocation9 + $0xf0] sm:$0xff]
    %v270 = vld [vmem:[#allocation9 + $0xf8] sm:$0xff]
    %v271 = vld [vmem:[#allocation2] ss:$8 sm:$0xf]
    %v304 = vunpack.c.l.b16 %v239
    %v305 = vunpack.c.h.b16 %v239
    %v306 = vunpack.c.l.b16 %v240
    %v307 = vunpack.c.h.b16 %v240
    %v308 = vunpack.c.l.b16 %v241
    %v309 = vunpack.c.h.b16 %v241
    %v310 = vunpack.c.l.b16 %v242
    %v311 = vunpack.c.h.b16 %v242
    %v312 = vunpack.c.l.b16 %v243
    %v313 = vunpack.c.h.b16 %v243
    %v314 = vunpack.c.l.b16 %v244
    %v315 = vunpack.c.h.b16 %v244
    %v316 = vunpack.c.l.b16 %v245
    %v317 = vunpack.c.h.b16 %v245
    %v318 = vunpack.c.l.b16 %v246
    %v319 = vunpack.c.h.b16 %v246
    %v320 = vunpack.c.l.b16 %v247
    %v321 = vunpack.c.h.b16 %v247
    %v322 = vunpack.c.l.b16 %v248
    %v323 = vunpack.c.h.b16 %v248
    %v324 = vunpack.c.l.b16 %v249
    %v325 = vunpack.c.h.b16 %v249
    %v326 = vunpack.c.l.b16 %v250
    %v327 = vunpack.c.h.b16 %v250
    %v328 = vunpack.c.l.b16 %v251
    %v329 = vunpack.c.h.b16 %v251
    %v330 = vunpack.c.l.b16 %v252
    %v331 = vunpack.c.h.b16 %v252
    %v332 = vunpack.c.l.b16 %v253
    %v333 = vunpack.c.h.b16 %v253
    %v334 = vunpack.c.l.b16 %v254
    %v335 = vunpack.c.h.b16 %v254
    %v336 = vunpack.c.l.b16 %v255
    %v337 = vunpack.c.h.b16 %v255
    %v338 = vunpack.c.l.b16 %v256
    %v339 = vunpack.c.h.b16 %v256
    %v340 = vunpack.c.l.b16 %v257
    %v341 = vunpack.c.h.b16 %v257
    %v342 = vunpack.c.l.b16 %v258
    %v343 = vunpack.c.h.b16 %v258
    %v344 = vunpack.c.l.b16 %v259
    %v345 = vunpack.c.h.b16 %v259
    %v346 = vunpack.c.l.b16 %v260
    %v347 = vunpack.c.h.b16 %v260
    %v348 = vunpack.c.l.b16 %v261
    %v349 = vunpack.c.h.b16 %v261
    %v350 = vunpack.c.l.b16 %v262
    %v351 = vunpack.c.h.b16 %v262
    %v352 = vunpack.c.l.b16 %v263
    %v353 = vunpack.c.h.b16 %v263
    %v354 = vunpack.c.l.b16 %v264
    %v355 = vunpack.c.h.b16 %v264
    %v356 = vunpack.c.l.b16 %v265
    %v357 = vunpack.c.h.b16 %v265
    %v358 = vunpack.c.l.b16 %v266
    %v359 = vunpack.c.h.b16 %v266
    %v360 = vunpack.c.l.b16 %v267
    %v361 = vunpack.c.h.b16 %v267
    %v362 = vunpack.c.l.b16 %v268
    %v363 = vunpack.c.h.b16 %v268
    %v364 = vunpack.c.l.b16 %v269
    %v365 = vunpack.c.h.b16 %v269
    %v366 = vunpack.c.l.b16 %v270
    %v367 = vunpack.c.h.b16 %v270
    %v368 = vpack.c.b16 %v308, %v304
    %v369 = vpack.c.b16 %v309, %v305
    %v370 = vpack.c.b16 %v310, %v306
    %v371 = vpack.c.b16 %v311, %v307
    %v372 = vpack.c.b16 %v316, %v312
    %v373 = vpack.c.b16 %v317, %v313
    %v374 = vpack.c.b16 %v318, %v314
    %v375 = vpack.c.b16 %v319, %v315
    %v376 = vpack.c.b16 %v324, %v320
    %v377 = vpack.c.b16 %v325, %v321
    %v378 = vpack.c.b16 %v326, %v322
    %v379 = vpack.c.b16 %v327, %v323
    %v380 = vpack.c.b16 %v332, %v328
    %v381 = vpack.c.b16 %v333, %v329
    %v382 = vpack.c.b16 %v334, %v330
    %v383 = vpack.c.b16 %v335, %v331
    %v384 = vpack.c.b16 %v340, %v336
    %v385 = vpack.c.b16 %v341, %v337
    %v386 = vpack.c.b16 %v342, %v338
    %v387 = vpack.c.b16 %v343, %v339
    %v388 = vpack.c.b16 %v348, %v344
    %v389 = vpack.c.b16 %v349, %v345
    %v390 = vpack.c.b16 %v350, %v346
    %v391 = vpack.c.b16 %v351, %v347
    %v392 = vpack.c.b16 %v356, %v352
    %v393 = vpack.c.b16 %v357, %v353
    %v394 = vpack.c.b16 %v358, %v354
    %v395 = vpack.c.b16 %v359, %v355
    %v396 = vpack.c.b16 %v364, %v360
    %v397 = vpack.c.b16 %v365, %v361
    %v398 = vpack.c.b16 %v366, %v362
    %v399 = vpack.c.b16 %v367, %v363
    %432 = vmatprep.subr.bf16.mxu0 %v397
    %433 = vmatpush1.bf16.msra.mxu0 %v396
    %434 = vmatprep.subr.bf16.mxu0 %v393
    %435 = vmatpush1.bf16.msra.mxu0 %v392
    %436 = vmatprep.subr.bf16.mxu0 %v389
    %437 = vmatpush1.bf16.msra.mxu0 %v388
    %438 = vmatprep.subr.bf16.mxu0 %v385
    %439 = vmatpush1.bf16.msra.mxu0 %v384
    %440 = vmatprep.subr.bf16.mxu0 %v381
    %441 = vmatpush1.bf16.msra.mxu0 %v380
    %442 = vmatprep.subr.bf16.mxu0 %v377
    %443 = vmatpush1.bf16.msra.mxu0 %v376
    %444 = vmatprep.subr.bf16.mxu0 %v373
    %445 = vmatpush1.bf16.msra.mxu0 %v372
    %446 = vmatprep.subr.bf16.mxu0 %v369
    %447 = vmatpush1.bf16.msra.mxu0 %v368
    %448 = vmatprep.subr.bf16.mxu0 0
    %449 = vmatpush2.bf16.msra.mxu0 0
    %450 = vmatprep.subr.bf16.mxu0 0
    %451 = vmatpush2.bf16.msra.mxu0 0
    %452 = vmatprep.subr.bf16.mxu0 0
    %453 = vmatpush2.bf16.msra.mxu0 0
    %454 = vmatprep.subr.bf16.mxu0 0
    %455 = vmatpush2.bf16.msra.mxu0 0
    %456 = vmatprep.subr.bf16.mxu0 0
    %457 = vmatpush2.bf16.msra.mxu0 0
    %458 = vmatprep.subr.bf16.mxu0 0
    %459 = vmatpush2.bf16.msra.mxu0 0
    %460 = vmatprep.subr.bf16.mxu0 0
    %461 = vmatpush2.bf16.msra.mxu0 0
    %462 = vmatprep.subr.bf16.mxu0 0
    %463 = vmatpush2.bf16.msra.mxu0 0
    %464 = vmatprep.mubr.bf16.mxu0 0
    %465 = vmatmul.mubr.bf16.gmra.mxu0 0
    %v466 = vpop.f32.mrf.mxu0
    %v467 = vadd.f32 0.0, %v466
    %v468 = vpop.f32.mrf.mxu0
    %v469 = vadd.f32 0.0, %v468
    %v470 = vpop.f32.mrf.mxu0
    %v471 = vpop.f32.mrf.mxu0
    %472 = vdwg.mxu0
    %473 = vmatprep.subr.bf16.mxu0 %v399
    %474 = vmatpush1.bf16.msra.mxu0 %v398
    %475 = vmatprep.subr.bf16.mxu0 %v395
    %476 = vmatpush1.bf16.msra.mxu0 %v394
    %477 = vmatprep.subr.bf16.mxu0 %v391
    %478 = vmatpush1.bf16.msra.mxu0 %v390
    %479 = vmatprep.subr.bf16.mxu0 %v387
    %480 = vmatpush1.bf16.msra.mxu0 %v386
    %481 = vmatprep.subr.bf16.mxu0 %v383
    %482 = vmatpush1.bf16.msra.mxu0 %v382
    %483 = vmatprep.subr.bf16.mxu0 %v379
    %484 = vmatpush1.bf16.msra.mxu0 %v378
    %485 = vmatprep.subr.bf16.mxu0 %v375
    %486 = vmatpush1.bf16.msra.mxu0 %v374
    %487 = vmatprep.subr.bf16.mxu0 %v371
    %488 = vmatpush1.bf16.msra.mxu0 %v370
    %489 = vmatprep.subr.bf16.mxu0 0
    %490 = vmatpush2.bf16.msra.mxu0 0
    %491 = vmatprep.subr.bf16.mxu0 0
    %492 = vmatpush2.bf16.msra.mxu0 0
    %493 = vmatprep.subr.bf16.mxu0 0
    %494 = vmatpush2.bf16.msra.mxu0 0
    %495 = vmatprep.subr.bf16.mxu0 0
    %496 = vmatpush2.bf16.msra.mxu0 0
    %497 = vmatprep.subr.bf16.mxu0 0
    %498 = vmatpush2.bf16.msra.mxu0 0
    %499 = vmatprep.subr.bf16.mxu0 0
    %500 = vmatpush2.bf16.msra.mxu0 0
    %501 = vmatprep.subr.bf16.mxu0 0
    %502 = vmatpush2.bf16.msra.mxu0 0
    %503 = vmatprep.subr.bf16.mxu0 0
    %504 = vmatpush2.bf16.msra.mxu0 0
    %505 = vmatprep.mubr.bf16.mxu0 0
    %506 = vmatmul.mubr.bf16.gmra.mxu0 0
    %v507 = vpop.f32.mrf.mxu0
    %v508 = vadd.f32 0.0, %v507
    %v509 = vpop.f32.mrf.mxu0
    %v510 = vadd.f32 0.0, %v509
    %v511 = vpop.f32.mrf.mxu0
    %v512 = vpop.f32.mrf.mxu0
    %513 = vdwg.mxu0
    %v518 = vcombine.low %v467, %v469
    %v519 = vcombine.low %v508, %v510
    %v521 = vunpack.c.l.s4 1966171168
    %v522 = vunpack.c.0.s8 %v521
    %v523 = vlaneseq
    %v524 = vshrl.u32 %v523, 7
    %v525 = vsub.s32 %v522, %v524
    %v526 = vrot.slane %v518, %v525
    %v528 = vunpack.c.l.s4 1966171168
    %v529 = vunpack.c.0.s8 %v528
    %v530 = vlaneseq
    %v531 = vshrl.u32 %v530, 7
    %v532 = vsub.s32 %v529, %v531
    %v533 = vrot.slane %v519, %v532
    %v534 = vcombine.low %v526, %v533
    %v536 = vunpack.c.l.s4 1966171168
    %v537 = vunpack.c.0.s8 %v536
    %v538 = vlaneseq
    %v539 = vshrl.u32 %v538, 7
    %v540 = vsub.s32 %v537, %v539
    %v541 = vrot.slane %v534, %v540
    %v543 = vadd.f32 %v271, %v541
    %v544 = vxor.u32 %v543, 2147483648
    %v545 = vmul.f32 %v544, 1.442695
    %v546 = vpow.pop %v545
    %v547 = vadd.f32 %v546, 1.0
    %v548 = vrcp.pop %v547
    %v549 = vmul.f32 1.0, %v548
    %v551 = vrot.slane %v543, 2
    %v553 = vtanh.pop %v551
    %v555 = vrot.slane %v549, 1
    %v557 = vmul.f32 %v555, 0.0
    %v558 = vmul.f32 %v549, %v553
    %v559 = vadd.f32 %v557, %v558
    %v560 = vtanh.pop %v559
    %v561 = vrot.slane %v549, 3
    %v563 = vmul.f32 %v561, %v560
    %564 = vst [vmem:[#allocation3] sm:$0x1] %v563
    %s565 = scalar_lea.vmem [#allocation2], 1
    %v566 = vld [vmem:[%s565] ss:$8 sm:$0xf]
    %v567 = vpack.c.bf16 %v563, %v563
    %568 = vmatprep.subr.bf16.mxu0 %v397
    %569 = vmatpush1.bf16.msra.mxu0 %v396
    %570 = vmatprep.subr.bf16.mxu0 %v393
    %571 = vmatpush1.bf16.msra.mxu0 %v392
    %572 = vmatprep.subr.bf16.mxu0 %v389
    %573 = vmatpush1.bf16.msra.mxu0 %v388
    %574 = vmatprep.subr.bf16.mxu0 %v385
    %575 = vmatpush1.bf16.msra.mxu0 %v384
    %576 = vmatprep.subr.bf16.mxu0 %v381
    %577 = vmatpush1.bf16.msra.mxu0 %v380
    %578 = vmatprep.subr.bf16.mxu0 %v377
    %579 = vmatpush1.bf16.msra.mxu0 %v376
    %580 = vmatprep.subr.bf16.mxu0 %v373
    %581 = vmatpush1.bf16.msra.mxu0 %v372
    %582 = vmatprep.subr.bf16.mxu0 %v369
    %583 = vmatpush1.bf16.msra.mxu0 %v368
    %584 = vmatprep.subr.bf16.mxu0 0
    %585 = vmatpush2.bf16.msra.mxu0 0
    %586 = vmatprep.subr.bf16.mxu0 0
    %587 = vmatpush2.bf16.msra.mxu0 0
    %588 = vmatprep.subr.bf16.mxu0 0
    %589 = vmatpush2.bf16.msra.mxu0 0
    %590 = vmatprep.subr.bf16.mxu0 0
    %591 = vmatpush2.bf16.msra.mxu0 0
    %592 = vmatprep.subr.bf16.mxu0 0
    %593 = vmatpush2.bf16.msra.mxu0 0
    %594 = vmatprep.subr.bf16.mxu0 0
    %595 = vmatpush2.bf16.msra.mxu0 0
    %596 = vmatprep.subr.bf16.mxu0 0
    %597 = vmatpush2.bf16.msra.mxu0 0
    %598 = vmatprep.subr.bf16.mxu0 0
    %599 = vmatpush2.bf16.msra.mxu0 0
    %600 = vmatprep.mubr.bf16.mxu0 0
    %601 = vmatmul.mubr.bf16.gmra.mxu0 %v567
    %v602 = vpop.f32.mrf.mxu0
    %v603 = vadd.f32 0.0, %v602
    %v604 = vpop.f32.mrf.mxu0
    %v605 = vadd.f32 0.0, %v604
    %v606 = vpop.f32.mrf.mxu0
    %v607 = vpop.f32.mrf.mxu0
    %608 = vdwg.mxu0
    %609 = vmatprep.subr.bf16.mxu0 %v399
    %610 = vmatpush1.bf16.msra.mxu0 %v398
    %611 = vmatprep.subr.bf16.mxu0 %v395
    %612 = vmatpush1.bf16.msra.mxu0 %v394
    %613 = vmatprep.subr.bf16.mxu0 %v391
    %614 = vmatpush1.bf16.msra.mxu0 %v390
    %615 = vmatprep.subr.bf16.mxu0 %v387
    %616 = vmatpush1.bf16.msra.mxu0 %v386
    %617 = vmatprep.subr.bf16.mxu0 %v383
    %618 = vmatpush1.bf16.msra.mxu0 %v382
    %619 = vmatprep.subr.bf16.mxu0 %v379
    %620 = vmatpush1.bf16.msra.mxu0 %v378
    %621 = vmatprep.subr.bf16.mxu0 %v375
    %622 = vmatpush1.bf16.msra.mxu0 %v374
    %623 = vmatprep.subr.bf16.mxu0 %v371
    %624 = vmatpush1.bf16.msra.mxu0 %v370
    %625 = vmatprep.subr.bf16.mxu0 0
    %626 = vmatpush2.bf16.msra.mxu0 0
    %627 = vmatprep.subr.bf16.mxu0 0
    %628 = vmatpush2.bf16.msra.mxu0 0
    %629 = vmatprep.subr.bf16.mxu0 0
    %630 = vmatpush2.bf16.msra.mxu0 0
    %631 = vmatprep.subr.bf16.mxu0 0
    %632 = vmatpush2.bf16.msra.mxu0 0
    %633 = vmatprep.subr.bf16.mxu0 0
    %634 = vmatpush2.bf16.msra.mxu0 0
    %635 = vmatprep.subr.bf16.mxu0 0
    %636 = vmatpush2.bf16.msra.mxu0 0
    %637 = vmatprep.subr.bf16.mxu0 0
    %638 = vmatpush2.bf16.msra.mxu0 0
    %639 = vmatprep.subr.bf16.mxu0 0
    %640 = vmatpush2.bf16.msra.mxu0 0
    %641 = vmatprep.mubr.bf16.mxu0 0
    %642 = vmatmul.mubr.bf16.gmra.mxu0 %v567
    %v643 = vpop.f32.mrf.mxu0
    %v644 = vadd.f32 0.0, %v643
    %v645 = vpop.f32.mrf.mxu0
    %v646 = vadd.f32 0.0, %v645
    %v647 = vpop.f32.mrf.mxu0
    %v648 = vpop.f32.mrf.mxu0
    %649 = vdwg.mxu0
    %v654 = vcombine.low %v603, %v605
    %v655 = vcombine.low %v644, %v646
    %v657 = vunpack.c.l.s4 1966171168
    %v658 = vunpack.c.0.s8 %v657
    %v659 = vlaneseq
    %v660 = vshrl.u32 %v659, 7
    %v661 = vsub.s32 %v658, %v660
    %v662 = vrot.slane %v654, %v661
    %v664 = vunpack.c.l.s4 1966171168
    %v665 = vunpack.c.0.s8 %v664
    %v666 = vlaneseq
    %v667 = vshrl.u32 %v666, 7
    %v668 = vsub.s32 %v665, %v667
    %v669 = vrot.slane %v655, %v668
    %v670 = vcombine.low %v662, %v669
    %v672 = vunpack.c.l.s4 1966171168
    %v673 = vunpack.c.0.s8 %v672
    %v674 = vlaneseq
    %v675 = vshrl.u32 %v674, 7
    %v676 = vsub.s32 %v673, %v675
    %v677 = vrot.slane %v670, %v676
    %v679 = vadd.f32 %v566, %v677
    %v680 = vxor.u32 %v679, 2147483648
    %v681 = vmul.f32 %v680, 1.442695
    %v682 = vpow.pop %v681
    %v683 = vadd.f32 %v682, 1.0
    %v684 = vrcp.pop %v683
    %v685 = vmul.f32 1.0, %v684
    %v687 = vrot.slane %v679, 2
    %v689 = vtanh.pop %v687
    %v691 = vrot.slane %v685, 1
    %v693 = vmul.f32 %v691, %v559
    %v694 = vmul.f32 %v685, %v689
    %v695 = vadd.f32 %v693, %v694
    %v696 = vtanh.pop %v695
    %v697 = vrot.slane %v685, 3
    %v699 = vmul.f32 %v697, %v696
    %700 = vst [vmem:[#allocation3 + $0x1] sm:$0x1] %v699
    %s701 = scalar_lea.vmem [#allocation2], 2
    %v702 = vld [vmem:[%s701] ss:$8 sm:$0xf]
    %v703 = vpack.c.bf16 %v699, %v699
    %704 = vmatprep.subr.bf16.mxu0 %v397
    %705 = vmatpush1.bf16.msra.mxu0 %v396
    %706 = vmatprep.subr.bf16.mxu0 %v393
    %707 = vmatpush1.bf16.msra.mxu0 %v392
    %708 = vmatprep.subr.bf16.mxu0 %v389
    %709 = vmatpush1.bf16.msra.mxu0 %v388
    %710 = vmatprep.subr.bf16.mxu0 %v385
    %711 = vmatpush1.bf16.msra.mxu0 %v384
    %712 = vmatprep.subr.bf16.mxu0 %v381
    %713 = vmatpush1.bf16.msra.mxu0 %v380
    %714 = vmatprep.subr.bf16.mxu0 %v377
    %715 = vmatpush1.bf16.msra.mxu0 %v376
    %716 = vmatprep.subr.bf16.mxu0 %v373
    %717 = vmatpush1.bf16.msra.mxu0 %v372
    %718 = vmatprep.subr.bf16.mxu0 %v369
    %719 = vmatpush1.bf16.msra.mxu0 %v368
    %720 = vmatprep.subr.bf16.mxu0 0
    %721 = vmatpush2.bf16.msra.mxu0 0
    %722 = vmatprep.subr.bf16.mxu0 0
    %723 = vmatpush2.bf16.msra.mxu0 0
    %724 = vmatprep.subr.bf16.mxu0 0
    %725 = vmatpush2.bf16.msra.mxu0 0
    %726 = vmatprep.subr.bf16.mxu0 0
    %727 = vmatpush2.bf16.msra.mxu0 0
    %728 = vmatprep.subr.bf16.mxu0 0
    %729 = vmatpush2.bf16.msra.mxu0 0
    %730 = vmatprep.subr.bf16.mxu0 0
    %731 = vmatpush2.bf16.msra.mxu0 0
    %732 = vmatprep.subr.bf16.mxu0 0
    %733 = vmatpush2.bf16.msra.mxu0 0
    %734 = vmatprep.subr.bf16.mxu0 0
    %735 = vmatpush2.bf16.msra.mxu0 0
    %736 = vmatprep.mubr.bf16.mxu0 0
    %737 = vmatmul.mubr.bf16.gmra.mxu0 %v703
    %v738 = vpop.f32.mrf.mxu0
    %v739 = vadd.f32 0.0, %v738
    %v740 = vpop.f32.mrf.mxu0
    %v741 = vadd.f32 0.0, %v740
    %v742 = vpop.f32.mrf.mxu0
    %v743 = vpop.f32.mrf.mxu0
    %744 = vdwg.mxu0
    %745 = vmatprep.subr.bf16.mxu0 %v399
    %746 = vmatpush1.bf16.msra.mxu0 %v398
    %747 = vmatprep.subr.bf16.mxu0 %v395
    %748 = vmatpush1.bf16.msra.mxu0 %v394
    %749 = vmatprep.subr.bf16.mxu0 %v391
    %750 = vmatpush1.bf16.msra.mxu0 %v390
    %751 = vmatprep.subr.bf16.mxu0 %v387
    %752 = vmatpush1.bf16.msra.mxu0 %v386
    %753 = vmatprep.subr.bf16.mxu0 %v383
    %754 = vmatpush1.bf16.msra.mxu0 %v382
    %755 = vmatprep.subr.bf16.mxu0 %v379
    %756 = vmatpush1.bf16.msra.mxu0 %v378
    %757 = vmatprep.subr.bf16.mxu0 %v375
    %758 = vmatpush1.bf16.msra.mxu0 %v374
    %759 = vmatprep.subr.bf16.mxu0 %v371
    %760 = vmatpush1.bf16.msra.mxu0 %v370
    %761 = vmatprep.subr.bf16.mxu0 0
    %762 = vmatpush2.bf16.msra.mxu0 0
    %763 = vmatprep.subr.bf16.mxu0 0
    %764 = vmatpush2.bf16.msra.mxu0 0
    %765 = vmatprep.subr.bf16.mxu0 0
    %766 = vmatpush2.bf16.msra.mxu0 0
    %767 = vmatprep.subr.bf16.mxu0 0
    %768 = vmatpush2.bf16.msra.mxu0 0
    %769 = vmatprep.subr.bf16.mxu0 0
    %770 = vmatpush2.bf16.msra.mxu0 0
    %771 = vmatprep.subr.bf16.mxu0 0
    %772 = vmatpush2.bf16.msra.mxu0 0
    %773 = vmatprep.subr.bf16.mxu0 0
    %774 = vmatpush2.bf16.msra.mxu0 0
    %775 = vmatprep.subr.bf16.mxu0 0
    %776 = vmatpush2.bf16.msra.mxu0 0
    %777 = vmatprep.mubr.bf16.mxu0 0
    %778 = vmatmul.mubr.bf16.gmra.mxu0 %v703
    %v779 = vpop.f32.mrf.mxu0
    %v780 = vadd.f32 0.0, %v779
    %v781 = vpop.f32.mrf.mxu0
    %v782 = vadd.f32 0.0, %v781
    %v783 = vpop.f32.mrf.mxu0
    %v784 = vpop.f32.mrf.mxu0
    %785 = vdwg.mxu0
    %v790 = vcombine.low %v739, %v741
    %v791 = vcombine.low %v780, %v782
    %v793 = vunpack.c.l.s4 1966171168
    %v794 = vunpack.c.0.s8 %v793
    %v795 = vlaneseq
    %v796 = vshrl.u32 %v795, 7
    %v797 = vsub.s32 %v794, %v796
    %v798 = vrot.slane %v790, %v797
    %v800 = vunpack.c.l.s4 1966171168
    %v801 = vunpack.c.0.s8 %v800
    %v802 = vlaneseq
    %v803 = vshrl.u32 %v802, 7
    %v804 = vsub.s32 %v801, %v803
    %v805 = vrot.slane %v791, %v804
    %v806 = vcombine.low %v798, %v805
    %v808 = vunpack.c.l.s4 1966171168
    %v809 = vunpack.c.0.s8 %v808
    %v810 = vlaneseq
    %v811 = vshrl.u32 %v810, 7
    %v812 = vsub.s32 %v809, %v811
    %v813 = vrot.slane %v806, %v812
    %v815 = vadd.f32 %v702, %v813
    %v816 = vxor.u32 %v815, 2147483648
    %v817 = vmul.f32 %v816, 1.442695
    %v818 = vpow.pop %v817
    %v819 = vadd.f32 %v818, 1.0
    %v820 = vrcp.pop %v819
    %v821 = vmul.f32 1.0, %v820
    %v823 = vrot.slane %v815, 2
    %v825 = vtanh.pop %v823
    %v827 = vrot.slane %v821, 1
    %v829 = vmul.f32 %v827, %v695
    %v830 = vmul.f32 %v821, %v825
    %v831 = vadd.f32 %v829, %v830
    %v832 = vtanh.pop %v831
    %v833 = vrot.slane %v821, 3
    %v835 = vmul.f32 %v833, %v832
    %836 = vst [vmem:[#allocation3 + $0x2] sm:$0x1] %v835
    %s837 = scalar_lea.vmem [#allocation2], 3
    %v838 = vld [vmem:[%s837] ss:$8 sm:$0xf]
    %v839 = vpack.c.bf16 %v835, %v835
    %840 = vmatprep.subr.bf16.mxu0 %v397
    %841 = vmatpush1.bf16.msra.mxu0 %v396
    %842 = vmatprep.subr.bf16.mxu0 %v393
    %843 = vmatpush1.bf16.msra.mxu0 %v392
    %844 = vmatprep.subr.bf16.mxu0 %v389
    %845 = vmatpush1.bf16.msra.mxu0 %v388
    %846 = vmatprep.subr.bf16.mxu0 %v385
    %847 = vmatpush1.bf16.msra.mxu0 %v384
    %848 = vmatprep.subr.bf16.mxu0 %v381
    %849 = vmatpush1.bf16.msra.mxu0 %v380
    %850 = vmatprep.subr.bf16.mxu0 %v377
    %851 = vmatpush1.bf16.msra.mxu0 %v376
    %852 = vmatprep.subr.bf16.mxu0 %v373
    %853 = vmatpush1.bf16.msra.mxu0 %v372
    %854 = vmatprep.subr.bf16.mxu0 %v369
    %855 = vmatpush1.bf16.msra.mxu0 %v368
    %856 = vmatprep.subr.bf16.mxu0 0
    %857 = vmatpush2.bf16.msra.mxu0 0
    %858 = vmatprep.subr.bf16.mxu0 0
    %859 = vmatpush2.bf16.msra.mxu0 0
    %860 = vmatprep.subr.bf16.mxu0 0
    %861 = vmatpush2.bf16.msra.mxu0 0
    %862 = vmatprep.subr.bf16.mxu0 0
    %863 = vmatpush2.bf16.msra.mxu0 0
    %864 = vmatprep.subr.bf16.mxu0 0
    %865 = vmatpush2.bf16.msra.mxu0 0
    %866 = vmatprep.subr.bf16.mxu0 0
    %867 = vmatpush2.bf16.msra.mxu0 0
    %868 = vmatprep.subr.bf16.mxu0 0
    %869 = vmatpush2.bf16.msra.mxu0 0
    %870 = vmatprep.subr.bf16.mxu0 0
    %871 = vmatpush2.bf16.msra.mxu0 0
    %872 = vmatprep.mubr.bf16.mxu0 0
    %873 = vmatmul.mubr.bf16.gmra.mxu0 %v839
    %v874 = vpop.f32.mrf.mxu0
    %v875 = vadd.f32 0.0, %v874
    %v876 = vpop.f32.mrf.mxu0
    %v877 = vadd.f32 0.0, %v876
    %v878 = vpop.f32.mrf.mxu0
    %v879 = vpop.f32.mrf.mxu0
    %880 = vdwg.mxu0
    %881 = vmatprep.subr.bf16.mxu0 %v399
    %882 = vmatpush1.bf16.msra.mxu0 %v398
    %883 = vmatprep.subr.bf16.mxu0 %v395
    %884 = vmatpush1.bf16.msra.mxu0 %v394
    %885 = vmatprep.subr.bf16.mxu0 %v391
    %886 = vmatpush1.bf16.msra.mxu0 %v390
    %887 = vmatprep.subr.bf16.mxu0 %v387
    %888 = vmatpush1.bf16.msra.mxu0 %v386
    %889 = vmatprep.subr.bf16.mxu0 %v383
    %890 = vmatpush1.bf16.msra.mxu0 %v382
    %891 = vmatprep.subr.bf16.mxu0 %v379
    %892 = vmatpush1.bf16.msra.mxu0 %v378
    %893 = vmatprep.subr.bf16.mxu0 %v375
    %894 = vmatpush1.bf16.msra.mxu0 %v374
    %895 = vmatprep.subr.bf16.mxu0 %v371
    %896 = vmatpush1.bf16.msra.mxu0 %v370
    %897 = vmatprep.subr.bf16.mxu0 0
    %898 = vmatpush2.bf16.msra.mxu0 0
    %899 = vmatprep.subr.bf16.mxu0 0
    %900 = vmatpush2.bf16.msra.mxu0 0
    %901 = vmatprep.subr.bf16.mxu0 0
    %902 = vmatpush2.bf16.msra.mxu0 0
    %903 = vmatprep.subr.bf16.mxu0 0
    %904 = vmatpush2.bf16.msra.mxu0 0
    %905 = vmatprep.subr.bf16.mxu0 0
    %906 = vmatpush2.bf16.msra.mxu0 0
    %907 = vmatprep.subr.bf16.mxu0 0
    %908 = vmatpush2.bf16.msra.mxu0 0
    %909 = vmatprep.subr.bf16.mxu0 0
    %910 = vmatpush2.bf16.msra.mxu0 0
    %911 = vmatprep.subr.bf16.mxu0 0
    %912 = vmatpush2.bf16.msra.mxu0 0
    %913 = vmatprep.mubr.bf16.mxu0 0
    %914 = vmatmul.mubr.bf16.gmra.mxu0 %v839
    %v915 = vpop.f32.mrf.mxu0
    %v916 = vadd.f32 0.0, %v915
    %v917 = vpop.f32.mrf.mxu0
    %v918 = vadd.f32 0.0, %v917
    %v919 = vpop.f32.mrf.mxu0
    %v920 = vpop.f32.mrf.mxu0
    %921 = vdwg.mxu0
    %v926 = vcombine.low %v875, %v877
    %v927 = vcombine.low %v916, %v918
    %v929 = vunpack.c.l.s4 1966171168
    %v930 = vunpack.c.0.s8 %v929
    %v931 = vlaneseq
    %v932 = vshrl.u32 %v931, 7
    %v933 = vsub.s32 %v930, %v932
    %v934 = vrot.slane %v926, %v933
    %v936 = vunpack.c.l.s4 1966171168
    %v937 = vunpack.c.0.s8 %v936
    %v938 = vlaneseq
    %v939 = vshrl.u32 %v938, 7
    %v940 = vsub.s32 %v937, %v939
    %v941 = vrot.slane %v927, %v940
    %v942 = vcombine.low %v934, %v941
    %v944 = vunpack.c.l.s4 1966171168
    %v945 = vunpack.c.0.s8 %v944
    %v946 = vlaneseq
    %v947 = vshrl.u32 %v946, 7
    %v948 = vsub.s32 %v945, %v947
    %v949 = vrot.slane %v942, %v948
    %v951 = vadd.f32 %v838, %v949
    %v952 = vxor.u32 %v951, 2147483648
    %v953 = vmul.f32 %v952, 1.442695
    %v954 = vpow.pop %v953
    %v955 = vadd.f32 %v954, 1.0
    %v956 = vrcp.pop %v955
    %v957 = vmul.f32 1.0, %v956
    %v959 = vrot.slane %v951, 2
    %v961 = vtanh.pop %v959
    %v963 = vrot.slane %v957, 1
    %v965 = vmul.f32 %v963, %v831
    %v966 = vmul.f32 %v957, %v961
    %v967 = vadd.f32 %v965, %v966
    %v968 = vtanh.pop %v967
    %v969 = vrot.slane %v957, 3
    %v971 = vmul.f32 %v969, %v968
    %972 = vst [vmem:[#allocation3 + $0x3] sm:$0x1] %v971
    %s973 = scalar_lea.vmem [#allocation2], 4
    %v974 = vld [vmem:[%s973] ss:$8 sm:$0xf]
    %v975 = vpack.c.bf16 %v971, %v971
    %976 = vmatprep.subr.bf16.mxu0 %v397
    %977 = vmatpush1.bf16.msra.mxu0 %v396
    %978 = vmatprep.subr.bf16.mxu0 %v393
    %979 = vmatpush1.bf16.msra.mxu0 %v392
    %980 = vmatprep.subr.bf16.mxu0 %v389
    %981 = vmatpush1.bf16.msra.mxu0 %v388
    %982 = vmatprep.subr.bf16.mxu0 %v385
    %983 = vmatpush1.bf16.msra.mxu0 %v384
    %984 = vmatprep.subr.bf16.mxu0 %v381
    %985 = vmatpush1.bf16.msra.mxu0 %v380
    %986 = vmatprep.subr.bf16.mxu0 %v377
    %987 = vmatpush1.bf16.msra.mxu0 %v376
    %988 = vmatprep.subr.bf16.mxu0 %v373
    %989 = vmatpush1.bf16.msra.mxu0 %v372
    %990 = vmatprep.subr.bf16.mxu0 %v369
    %991 = vmatpush1.bf16.msra.mxu0 %v368
    %992 = vmatprep.subr.bf16.mxu0 0
    %993 = vmatpush2.bf16.msra.mxu0 0
    %994 = vmatprep.subr.bf16.mxu0 0
    %995 = vmatpush2.bf16.msra.mxu0 0
    %996 = vmatprep.subr.bf16.mxu0 0
    %997 = vmatpush2.bf16.msra.mxu0 0
    %998 = vmatprep.subr.bf16.mxu0 0
    %999 = vmatpush2.bf16.msra.mxu0 0
    %1000 = vmatprep.subr.bf16.mxu0 0
    %1001 = vmatpush2.bf16.msra.mxu0 0
    %1002 = vmatprep.subr.bf16.mxu0 0
    %1003 = vmatpush2.bf16.msra.mxu0 0
    %1004 = vmatprep.subr.bf16.mxu0 0
    %1005 = vmatpush2.bf16.msra.mxu0 0
    %1006 = vmatprep.subr.bf16.mxu0 0
    %1007 = vmatpush2.bf16.msra.mxu0 0
    %1008 = vmatprep.mubr.bf16.mxu0 0
    %1009 = vmatmul.mubr.bf16.gmra.mxu0 %v975
    %v1010 = vpop.f32.mrf.mxu0
    %v1011 = vadd.f32 0.0, %v1010
    %v1012 = vpop.f32.mrf.mxu0
    %v1013 = vadd.f32 0.0, %v1012
    %v1014 = vpop.f32.mrf.mxu0
    %v1015 = vpop.f32.mrf.mxu0
    %1016 = vdwg.mxu0
    %1017 = vmatprep.subr.bf16.mxu0 %v399
    %1018 = vmatpush1.bf16.msra.mxu0 %v398
    %1019 = vmatprep.subr.bf16.mxu0 %v395
    %1020 = vmatpush1.bf16.msra.mxu0 %v394
    %1021 = vmatprep.subr.bf16.mxu0 %v391
    %1022 = vmatpush1.bf16.msra.mxu0 %v390
    %1023 = vmatprep.subr.bf16.mxu0 %v387
    %1024 = vmatpush1.bf16.msra.mxu0 %v386
    %1025 = vmatprep.subr.bf16.mxu0 %v383
    %1026 = vmatpush1.bf16.msra.mxu0 %v382
    %1027 = vmatprep.subr.bf16.mxu0 %v379
    %1028 = vmatpush1.bf16.msra.mxu0 %v378
    %1029 = vmatprep.subr.bf16.mxu0 %v375
    %1030 = vmatpush1.bf16.msra.mxu0 %v374
    %1031 = vmatprep.subr.bf16.mxu0 %v371
    %1032 = vmatpush1.bf16.msra.mxu0 %v370
    %1033 = vmatprep.subr.bf16.mxu0 0
    %1034 = vmatpush2.bf16.msra.mxu0 0
    %1035 = vmatprep.subr.bf16.mxu0 0
    %1036 = vmatpush2.bf16.msra.mxu0 0
    %1037 = vmatprep.subr.bf16.mxu0 0
    %1038 = vmatpush2.bf16.msra.mxu0 0
    %1039 = vmatprep.subr.bf16.mxu0 0
    %1040 = vmatpush2.bf16.msra.mxu0 0
    %1041 = vmatprep.subr.bf16.mxu0 0
    %1042 = vmatpush2.bf16.msra.mxu0 0
    %1043 = vmatprep.subr.bf16.mxu0 0
    %1044 = vmatpush2.bf16.msra.mxu0 0
    %1045 = vmatprep.subr.bf16.mxu0 0
    %1046 = vmatpush2.bf16.msra.mxu0 0
    %1047 = vmatprep.subr.bf16.mxu0 0
    %1048 = vmatpush2.bf16.msra.mxu0 0
    %1049 = vmatprep.mubr.bf16.mxu0 0
    %1050 = vmatmul.mubr.bf16.gmra.mxu0 %v975
    %v1051 = vpop.f32.mrf.mxu0
    %v1052 = vadd.f32 0.0, %v1051
    %v1053 = vpop.f32.mrf.mxu0
    %v1054 = vadd.f32 0.0, %v1053
    %v1055 = vpop.f32.mrf.mxu0
    %v1056 = vpop.f32.mrf.mxu0
    %1057 = vdwg.mxu0
    %v1062 = vcombine.low %v1011, %v1013
    %v1063 = vcombine.low %v1052, %v1054
    %v1065 = vunpack.c.l.s4 1966171168
    %v1066 = vunpack.c.0.s8 %v1065
    %v1067 = vlaneseq
    %v1068 = vshrl.u32 %v1067, 7
    %v1069 = vsub.s32 %v1066, %v1068
    %v1070 = vrot.slane %v1062, %v1069
    %v1072 = vunpack.c.l.s4 1966171168
    %v1073 = vunpack.c.0.s8 %v1072
    %v1074 = vlaneseq
    %v1075 = vshrl.u32 %v1074, 7
    %v1076 = vsub.s32 %v1073, %v1075
    %v1077 = vrot.slane %v1063, %v1076
    %v1078 = vcombine.low %v1070, %v1077
    %v1080 = vunpack.c.l.s4 1966171168
    %v1081 = vunpack.c.0.s8 %v1080
    %v1082 = vlaneseq
    %v1083 = vshrl.u32 %v1082, 7
    %v1084 = vsub.s32 %v1081, %v1083
    %v1085 = vrot.slane %v1078, %v1084
    %v1087 = vadd.f32 %v974, %v1085
    %v1088 = vxor.u32 %v1087, 2147483648
    %v1089 = vmul.f32 %v1088, 1.442695
    %v1090 = vpow.pop %v1089
    %v1091 = vadd.f32 %v1090, 1.0
    %v1092 = vrcp.pop %v1091
    %v1093 = vmul.f32 1.0, %v1092
    %v1095 = vrot.slane %v1087, 2
    %v1097 = vtanh.pop %v1095
    %v1099 = vrot.slane %v1093, 1
    %v1101 = vmul.f32 %v1099, %v967
    %v1102 = vmul.f32 %v1093, %v1097
    %v1103 = vadd.f32 %v1101, %v1102
    %v1104 = vtanh.pop %v1103
    %v1105 = vrot.slane %v1093, 3
    %v1107 = vmul.f32 %v1105, %v1104
    %1108 = vst [vmem:[#allocation3 + $0x4] sm:$0x1] %v1107
    %s1109 = scalar_lea.vmem [#allocation2], 5
    %v1110 = vld [vmem:[%s1109] ss:$8 sm:$0xf]
    %v1111 = vpack.c.bf16 %v1107, %v1107
    %1112 = vmatprep.subr.bf16.mxu0 %v397
    %1113 = vmatpush1.bf16.msra.mxu0 %v396
    %1114 = vmatprep.subr.bf16.mxu0 %v393
    %1115 = vmatpush1.bf16.msra.mxu0 %v392
    %1116 = vmatprep.subr.bf16.mxu0 %v389
    %1117 = vmatpush1.bf16.msra.mxu0 %v388
    %1118 = vmatprep.subr.bf16.mxu0 %v385
    %1119 = vmatpush1.bf16.msra.mxu0 %v384
    %1120 = vmatprep.subr.bf16.mxu0 %v381
    %1121 = vmatpush1.bf16.msra.mxu0 %v380
    %1122 = vmatprep.subr.bf16.mxu0 %v377
    %1123 = vmatpush1.bf16.msra.mxu0 %v376
    %1124 = vmatprep.subr.bf16.mxu0 %v373
    %1125 = vmatpush1.bf16.msra.mxu0 %v372
    %1126 = vmatprep.subr.bf16.mxu0 %v369
    %1127 = vmatpush1.bf16.msra.mxu0 %v368
    %1128 = vmatprep.subr.bf16.mxu0 0
    %1129 = vmatpush2.bf16.msra.mxu0 0
    %1130 = vmatprep.subr.bf16.mxu0 0
    %1131 = vmatpush2.bf16.msra.mxu0 0
    %1132 = vmatprep.subr.bf16.mxu0 0
    %1133 = vmatpush2.bf16.msra.mxu0 0
    %1134 = vmatprep.subr.bf16.mxu0 0
    %1135 = vmatpush2.bf16.msra.mxu0 0
    %1136 = vmatprep.subr.bf16.mxu0 0
    %1137 = vmatpush2.bf16.msra.mxu0 0
    %1138 = vmatprep.subr.bf16.mxu0 0
    %1139 = vmatpush2.bf16.msra.mxu0 0
    %1140 = vmatprep.subr.bf16.mxu0 0
    %1141 = vmatpush2.bf16.msra.mxu0 0
    %1142 = vmatprep.subr.bf16.mxu0 0
    %1143 = vmatpush2.bf16.msra.mxu0 0
    %1144 = vmatprep.mubr.bf16.mxu0 0
    %1145 = vmatmul.mubr.bf16.gmra.mxu0 %v1111
    %v1146 = vpop.f32.mrf.mxu0
    %v1147 = vadd.f32 0.0, %v1146
    %v1148 = vpop.f32.mrf.mxu0
    %v1149 = vadd.f32 0.0, %v1148
    %v1150 = vpop.f32.mrf.mxu0
    %v1151 = vpop.f32.mrf.mxu0
    %1152 = vdwg.mxu0
    %1153 = vmatprep.subr.bf16.mxu0 %v399
    %1154 = vmatpush1.bf16.msra.mxu0 %v398
    %1155 = vmatprep.subr.bf16.mxu0 %v395
    %1156 = vmatpush1.bf16.msra.mxu0 %v394
    %1157 = vmatprep.subr.bf16.mxu0 %v391
    %1158 = vmatpush1.bf16.msra.mxu0 %v390
    %1159 = vmatprep.subr.bf16.mxu0 %v387
    %1160 = vmatpush1.bf16.msra.mxu0 %v386
    %1161 = vmatprep.subr.bf16.mxu0 %v383
    %1162 = vmatpush1.bf16.msra.mxu0 %v382
    %1163 = vmatprep.subr.bf16.mxu0 %v379
    %1164 = vmatpush1.bf16.msra.mxu0 %v378
    %1165 = vmatprep.subr.bf16.mxu0 %v375
    %1166 = vmatpush1.bf16.msra.mxu0 %v374
    %1167 = vmatprep.subr.bf16.mxu0 %v371
    %1168 = vmatpush1.bf16.msra.mxu0 %v370
    %1169 = vmatprep.subr.bf16.mxu0 0
    %1170 = vmatpush2.bf16.msra.mxu0 0
    %1171 = vmatprep.subr.bf16.mxu0 0
    %1172 = vmatpush2.bf16.msra.mxu0 0
    %1173 = vmatprep.subr.bf16.mxu0 0
    %1174 = vmatpush2.bf16.msra.mxu0 0
    %1175 = vmatprep.subr.bf16.mxu0 0
    %1176 = vmatpush2.bf16.msra.mxu0 0
    %1177 = vmatprep.subr.bf16.mxu0 0
    %1178 = vmatpush2.bf16.msra.mxu0 0
    %1179 = vmatprep.subr.bf16.mxu0 0
    %1180 = vmatpush2.bf16.msra.mxu0 0
    %1181 = vmatprep.subr.bf16.mxu0 0
    %1182 = vmatpush2.bf16.msra.mxu0 0
    %1183 = vmatprep.subr.bf16.mxu0 0
    %1184 = vmatpush2.bf16.msra.mxu0 0
    %1185 = vmatprep.mubr.bf16.mxu0 0
    %1186 = vmatmul.mubr.bf16.gmra.mxu0 %v1111
    %v1187 = vpop.f32.mrf.mxu0
    %v1188 = vadd.f32 0.0, %v1187
    %v1189 = vpop.f32.mrf.mxu0
    %v1190 = vadd.f32 0.0, %v1189
    %v1191 = vpop.f32.mrf.mxu0
    %v1192 = vpop.f32.mrf.mxu0
    %1193 = vdwg.mxu0
    %v1198 = vcombine.low %v1147, %v1149
    %v1199 = vcombine.low %v1188, %v1190
    %v1201 = vunpack.c.l.s4 1966171168
    %v1202 = vunpack.c.0.s8 %v1201
    %v1203 = vlaneseq
    %v1204 = vshrl.u32 %v1203, 7
    %v1205 = vsub.s32 %v1202, %v1204
    %v1206 = vrot.slane %v1198, %v1205
    %v1208 = vunpack.c.l.s4 1966171168
    %v1209 = vunpack.c.0.s8 %v1208
    %v1210 = vlaneseq
    %v1211 = vshrl.u32 %v1210, 7
    %v1212 = vsub.s32 %v1209, %v1211
    %v1213 = vrot.slane %v1199, %v1212
    %v1214 = vcombine.low %v1206, %v1213
    %v1216 = vunpack.c.l.s4 1966171168
    %v1217 = vunpack.c.0.s8 %v1216
    %v1218 = vlaneseq
    %v1219 = vshrl.u32 %v1218, 7
    %v1220 = vsub.s32 %v1217, %v1219
    %v1221 = vrot.slane %v1214, %v1220
    %v1223 = vadd.f32 %v1110, %v1221
    %v1224 = vxor.u32 %v1223, 2147483648
    %v1225 = vmul.f32 %v1224, 1.442695
    %v1226 = vpow.pop %v1225
    %v1227 = vadd.f32 %v1226, 1.0
    %v1228 = vrcp.pop %v1227
    %v1229 = vmul.f32 1.0, %v1228
    %v1231 = vrot.slane %v1223, 2
    %v1233 = vtanh.pop %v1231
    %v1235 = vrot.slane %v1229, 1
    %v1237 = vmul.f32 %v1235, %v1103
    %v1238 = vmul.f32 %v1229, %v1233
    %v1239 = vadd.f32 %v1237, %v1238
    %v1240 = vtanh.pop %v1239
    %v1241 = vrot.slane %v1229, 3
    %v1243 = vmul.f32 %v1241, %v1240
    %1244 = vst [vmem:[#allocation3 + $0x5] sm:$0x1] %v1243
    %s1245 = scalar_lea.vmem [#allocation2], 6
    %v1246 = vld [vmem:[%s1245] ss:$8 sm:$0xf]
    %v1247 = vpack.c.bf16 %v1243, %v1243
    %1248 = vmatprep.subr.bf16.mxu0 %v397
    %1249 = vmatpush1.bf16.msra.mxu0 %v396
    %1250 = vmatprep.subr.bf16.mxu0 %v393
    %1251 = vmatpush1.bf16.msra.mxu0 %v392
    %1252 = vmatprep.subr.bf16.mxu0 %v389
    %1253 = vmatpush1.bf16.msra.mxu0 %v388
    %1254 = vmatprep.subr.bf16.mxu0 %v385
    %1255 = vmatpush1.bf16.msra.mxu0 %v384
    %1256 = vmatprep.subr.bf16.mxu0 %v381
    %1257 = vmatpush1.bf16.msra.mxu0 %v380
    %1258 = vmatprep.subr.bf16.mxu0 %v377
    %1259 = vmatpush1.bf16.msra.mxu0 %v376
    %1260 = vmatprep.subr.bf16.mxu0 %v373
    %1261 = vmatpush1.bf16.msra.mxu0 %v372
    %1262 = vmatprep.subr.bf16.mxu0 %v369
    %1263 = vmatpush1.bf16.msra.mxu0 %v368
    %1264 = vmatprep.subr.bf16.mxu0 0
    %1265 = vmatpush2.bf16.msra.mxu0 0
    %1266 = vmatprep.subr.bf16.mxu0 0
    %1267 = vmatpush2.bf16.msra.mxu0 0
    %1268 = vmatprep.subr.bf16.mxu0 0
    %1269 = vmatpush2.bf16.msra.mxu0 0
    %1270 = vmatprep.subr.bf16.mxu0 0
    %1271 = vmatpush2.bf16.msra.mxu0 0
    %1272 = vmatprep.subr.bf16.mxu0 0
    %1273 = vmatpush2.bf16.msra.mxu0 0
    %1274 = vmatprep.subr.bf16.mxu0 0
    %1275 = vmatpush2.bf16.msra.mxu0 0
    %1276 = vmatprep.subr.bf16.mxu0 0
    %1277 = vmatpush2.bf16.msra.mxu0 0
    %1278 = vmatprep.subr.bf16.mxu0 0
    %1279 = vmatpush2.bf16.msra.mxu0 0
    %1280 = vmatprep.mubr.bf16.mxu0 0
    %1281 = vmatmul.mubr.bf16.gmra.mxu0 %v1247
    %v1282 = vpop.f32.mrf.mxu0
    %v1283 = vadd.f32 0.0, %v1282
    %v1284 = vpop.f32.mrf.mxu0
    %v1285 = vadd.f32 0.0, %v1284
    %v1286 = vpop.f32.mrf.mxu0
    %v1287 = vpop.f32.mrf.mxu0
    %1288 = vdwg.mxu0
    %1289 = vmatprep.subr.bf16.mxu0 %v399
    %1290 = vmatpush1.bf16.msra.mxu0 %v398
    %1291 = vmatprep.subr.bf16.mxu0 %v395
    %1292 = vmatpush1.bf16.msra.mxu0 %v394
    %1293 = vmatprep.subr.bf16.mxu0 %v391
    %1294 = vmatpush1.bf16.msra.mxu0 %v390
    %1295 = vmatprep.subr.bf16.mxu0 %v387
    %1296 = vmatpush1.bf16.msra.mxu0 %v386
    %1297 = vmatprep.subr.bf16.mxu0 %v383
    %1298 = vmatpush1.bf16.msra.mxu0 %v382
    %1299 = vmatprep.subr.bf16.mxu0 %v379
    %1300 = vmatpush1.bf16.msra.mxu0 %v378
    %1301 = vmatprep.subr.bf16.mxu0 %v375
    %1302 = vmatpush1.bf16.msra.mxu0 %v374
    %1303 = vmatprep.subr.bf16.mxu0 %v371
    %1304 = vmatpush1.bf16.msra.mxu0 %v370
    %1305 = vmatprep.subr.bf16.mxu0 0
    %1306 = vmatpush2.bf16.msra.mxu0 0
    %1307 = vmatprep.subr.bf16.mxu0 0
    %1308 = vmatpush2.bf16.msra.mxu0 0
    %1309 = vmatprep.subr.bf16.mxu0 0
    %1310 = vmatpush2.bf16.msra.mxu0 0
    %1311 = vmatprep.subr.bf16.mxu0 0
    %1312 = vmatpush2.bf16.msra.mxu0 0
    %1313 = vmatprep.subr.bf16.mxu0 0
    %1314 = vmatpush2.bf16.msra.mxu0 0
    %1315 = vmatprep.subr.bf16.mxu0 0
    %1316 = vmatpush2.bf16.msra.mxu0 0
    %1317 = vmatprep.subr.bf16.mxu0 0
    %1318 = vmatpush2.bf16.msra.mxu0 0
    %1319 = vmatprep.subr.bf16.mxu0 0
    %1320 = vmatpush2.bf16.msra.mxu0 0
    %1321 = vmatprep.mubr.bf16.mxu0 0
    %1322 = vmatmul.mubr.bf16.gmra.mxu0 %v1247
    %v1323 = vpop.f32.mrf.mxu0
    %v1324 = vadd.f32 0.0, %v1323
    %v1325 = vpop.f32.mrf.mxu0
    %v1326 = vadd.f32 0.0, %v1325
    %v1327 = vpop.f32.mrf.mxu0
    %v1328 = vpop.f32.mrf.mxu0
    %1329 = vdwg.mxu0
    %v1334 = vcombine.low %v1283, %v1285
    %v1335 = vcombine.low %v1324, %v1326
    %v1337 = vunpack.c.l.s4 1966171168
    %v1338 = vunpack.c.0.s8 %v1337
    %v1339 = vlaneseq
    %v1340 = vshrl.u32 %v1339, 7
    %v1341 = vsub.s32 %v1338, %v1340
    %v1342 = vrot.slane %v1334, %v1341
    %v1344 = vunpack.c.l.s4 1966171168
    %v1345 = vunpack.c.0.s8 %v1344
    %v1346 = vlaneseq
    %v1347 = vshrl.u32 %v1346, 7
    %v1348 = vsub.s32 %v1345, %v1347
    %v1349 = vrot.slane %v1335, %v1348
    %v1350 = vcombine.low %v1342, %v1349
    %v1352 = vunpack.c.l.s4 1966171168
    %v1353 = vunpack.c.0.s8 %v1352
    %v1354 = vlaneseq
    %v1355 = vshrl.u32 %v1354, 7
    %v1356 = vsub.s32 %v1353, %v1355
    %v1357 = vrot.slane %v1350, %v1356
    %v1359 = vadd.f32 %v1246, %v1357
    %v1360 = vxor.u32 %v1359, 2147483648
    %v1361 = vmul.f32 %v1360, 1.442695
    %v1362 = vpow.pop %v1361
    %v1363 = vadd.f32 %v1362, 1.0
    %v1364 = vrcp.pop %v1363
    %v1365 = vmul.f32 1.0, %v1364
    %v1367 = vrot.slane %v1359, 2
    %v1369 = vtanh.pop %v1367
    %v1371 = vrot.slane %v1365, 1
    %v1373 = vmul.f32 %v1371, %v1239
    %v1374 = vmul.f32 %v1365, %v1369
    %v1375 = vadd.f32 %v1373, %v1374
    %v1376 = vtanh.pop %v1375
    %v1377 = vrot.slane %v1365, 3
    %v1379 = vmul.f32 %v1377, %v1376
    %1380 = vst [vmem:[#allocation3 + $0x6] sm:$0x1] %v1379
    %s1381 = scalar_lea.vmem [#allocation2], 7
    %v1382 = vld [vmem:[%s1381] ss:$8 sm:$0xf]
    %v1383 = vpack.c.bf16 %v1379, %v1379
    %1384 = vmatprep.subr.bf16.mxu0 %v397
    %1385 = vmatpush1.bf16.msra.mxu0 %v396
    %1386 = vmatprep.subr.bf16.mxu0 %v393
    %1387 = vmatpush1.bf16.msra.mxu0 %v392
    %1388 = vmatprep.subr.bf16.mxu0 %v389
    %1389 = vmatpush1.bf16.msra.mxu0 %v388
    %1390 = vmatprep.subr.bf16.mxu0 %v385
    %1391 = vmatpush1.bf16.msra.mxu0 %v384
    %1392 = vmatprep.subr.bf16.mxu0 %v381
    %1393 = vmatpush1.bf16.msra.mxu0 %v380
    %1394 = vmatprep.subr.bf16.mxu0 %v377
    %1395 = vmatpush1.bf16.msra.mxu0 %v376
    %1396 = vmatprep.subr.bf16.mxu0 %v373
    %1397 = vmatpush1.bf16.msra.mxu0 %v372
    %1398 = vmatprep.subr.bf16.mxu0 %v369
    %1399 = vmatpush1.bf16.msra.mxu0 %v368
    %1400 = vmatprep.subr.bf16.mxu0 0
    %1401 = vmatpush2.bf16.msra.mxu0 0
    %1402 = vmatprep.subr.bf16.mxu0 0
    %1403 = vmatpush2.bf16.msra.mxu0 0
    %1404 = vmatprep.subr.bf16.mxu0 0
    %1405 = vmatpush2.bf16.msra.mxu0 0
    %1406 = vmatprep.subr.bf16.mxu0 0
    %1407 = vmatpush2.bf16.msra.mxu0 0
    %1408 = vmatprep.subr.bf16.mxu0 0
    %1409 = vmatpush2.bf16.msra.mxu0 0
    %1410 = vmatprep.subr.bf16.mxu0 0
    %1411 = vmatpush2.bf16.msra.mxu0 0
    %1412 = vmatprep.subr.bf16.mxu0 0
    %1413 = vmatpush2.bf16.msra.mxu0 0
    %1414 = vmatprep.subr.bf16.mxu0 0
    %1415 = vmatpush2.bf16.msra.mxu0 0
    %1416 = vmatprep.mubr.bf16.mxu0 0
    %1417 = vmatmul.mubr.bf16.gmra.mxu0 %v1383
    %v1418 = vpop.f32.mrf.mxu0
    %v1419 = vadd.f32 0.0, %v1418
    %v1420 = vpop.f32.mrf.mxu0
    %v1421 = vadd.f32 0.0, %v1420
    %v1422 = vpop.f32.mrf.mxu0
    %v1423 = vpop.f32.mrf.mxu0
    %1424 = vdwg.mxu0
    %1425 = vmatprep.subr.bf16.mxu0 %v399
    %1426 = vmatpush1.bf16.msra.mxu0 %v398
    %1427 = vmatprep.subr.bf16.mxu0 %v395
    %1428 = vmatpush1.bf16.msra.mxu0 %v394
    %1429 = vmatprep.subr.bf16.mxu0 %v391
    %1430 = vmatpush1.bf16.msra.mxu0 %v390
    %1431 = vmatprep.subr.bf16.mxu0 %v387
    %1432 = vmatpush1.bf16.msra.mxu0 %v386
    %1433 = vmatprep.subr.bf16.mxu0 %v383
    %1434 = vmatpush1.bf16.msra.mxu0 %v382
    %1435 = vmatprep.subr.bf16.mxu0 %v379
    %1436 = vmatpush1.bf16.msra.mxu0 %v378
    %1437 = vmatprep.subr.bf16.mxu0 %v375
    %1438 = vmatpush1.bf16.msra.mxu0 %v374
    %1439 = vmatprep.subr.bf16.mxu0 %v371
    %1440 = vmatpush1.bf16.msra.mxu0 %v370
    %1441 = vmatprep.subr.bf16.mxu0 0
    %1442 = vmatpush2.bf16.msra.mxu0 0
    %1443 = vmatprep.subr.bf16.mxu0 0
    %1444 = vmatpush2.bf16.msra.mxu0 0
    %1445 = vmatprep.subr.bf16.mxu0 0
    %1446 = vmatpush2.bf16.msra.mxu0 0
    %1447 = vmatprep.subr.bf16.mxu0 0
    %1448 = vmatpush2.bf16.msra.mxu0 0
    %1449 = vmatprep.subr.bf16.mxu0 0
    %1450 = vmatpush2.bf16.msra.mxu0 0
    %1451 = vmatprep.subr.bf16.mxu0 0
    %1452 = vmatpush2.bf16.msra.mxu0 0
    %1453 = vmatprep.subr.bf16.mxu0 0
    %1454 = vmatpush2.bf16.msra.mxu0 0
    %1455 = vmatprep.subr.bf16.mxu0 0
    %1456 = vmatpush2.bf16.msra.mxu0 0
    %1457 = vmatprep.mubr.bf16.mxu0 0
    %1458 = vmatmul.mubr.bf16.gmra.mxu0 %v1383
    %v1459 = vpop.f32.mrf.mxu0
    %v1460 = vadd.f32 0.0, %v1459
    %v1461 = vpop.f32.mrf.mxu0
    %v1462 = vadd.f32 0.0, %v1461
    %v1463 = vpop.f32.mrf.mxu0
    %v1464 = vpop.f32.mrf.mxu0
    %1465 = vdwg.mxu0
    %v1470 = vcombine.low %v1419, %v1421
    %v1471 = vcombine.low %v1460, %v1462
    %v1473 = vunpack.c.l.s4 1966171168
    %v1474 = vunpack.c.0.s8 %v1473
    %v1475 = vlaneseq
    %v1476 = vshrl.u32 %v1475, 7
    %v1477 = vsub.s32 %v1474, %v1476
    %v1478 = vrot.slane %v1470, %v1477
    %v1480 = vunpack.c.l.s4 1966171168
    %v1481 = vunpack.c.0.s8 %v1480
    %v1482 = vlaneseq
    %v1483 = vshrl.u32 %v1482, 7
    %v1484 = vsub.s32 %v1481, %v1483
    %v1485 = vrot.slane %v1471, %v1484
    %v1486 = vcombine.low %v1478, %v1485
    %v1488 = vunpack.c.l.s4 1966171168
    %v1489 = vunpack.c.0.s8 %v1488
    %v1490 = vlaneseq
    %v1491 = vshrl.u32 %v1490, 7
    %v1492 = vsub.s32 %v1489, %v1491
    %v1493 = vrot.slane %v1486, %v1492
    %v1495 = vadd.f32 %v1382, %v1493
    %v1496 = vxor.u32 %v1495, 2147483648
    %v1497 = vmul.f32 %v1496, 1.442695
    %v1498 = vpow.pop %v1497
    %v1499 = vadd.f32 %v1498, 1.0
    %v1500 = vrcp.pop %v1499
    %v1501 = vmul.f32 1.0, %v1500
    %v1503 = vrot.slane %v1495, 2
    %v1505 = vtanh.pop %v1503
    %v1507 = vrot.slane %v1501, 1
    %v1509 = vmul.f32 %v1507, %v1375
    %v1510 = vmul.f32 %v1501, %v1505
    %v1511 = vadd.f32 %v1509, %v1510
    %v1512 = vtanh.pop %v1511
    %v1513 = vrot.slane %v1501, 3
    %v1515 = vmul.f32 %v1513, %v1512
    %1516 = vst [vmem:[#allocation3 + $0x7] sm:$0x1] %v1515
    %v1517 = vld [vmem:[#allocation3] sm:$0xff]
    %v1518 = vpack.c.bf16 %v1517, %v1517
    %v1519 = vld [vmem:[#allocation10] sm:$0xf]
    %v1520 = vld [vmem:[#allocation10 + $0x4] sm:$0xf]
    %v1521 = vld [vmem:[#allocation10 + $0x8] sm:$0xf]
    %v1522 = vld [vmem:[#allocation10 + $0xc] sm:$0xf]
    %v1523 = vld [vmem:[#allocation10 + $0x10] sm:$0xf]
    %v1524 = vld [vmem:[#allocation10 + $0x14] sm:$0xf]
    %v1525 = vld [vmem:[#allocation10 + $0x18] sm:$0xf]
    %v1526 = vld [vmem:[#allocation10 + $0x1c] sm:$0xf]
    %v1527 = vld [vmem:[#allocation10 + $0x20] sm:$0xf]
    %v1528 = vld [vmem:[#allocation10 + $0x24] sm:$0xf]
    %v1529 = vld [vmem:[#allocation10 + $0x28] sm:$0xf]
    %v1530 = vld [vmem:[#allocation10 + $0x2c] sm:$0xf]
    %v1531 = vld [vmem:[#allocation10 + $0x30] sm:$0xf]
    %v1532 = vld [vmem:[#allocation10 + $0x34] sm:$0xf]
    %v1533 = vld [vmem:[#allocation10 + $0x38] sm:$0xf]
    %v1534 = vld [vmem:[#allocation10 + $0x3c] sm:$0xf]
    %v1535 = vld [vmem:[%s5] sm:$0x1]
    %v1537 = vlaneseq
    %v1538 = vshrl.u32 %v1537, 7
    %v1539 = vsub.s32 0, %v1538
    %v1540 = vrot.slane %v1535, %v1539
    %v1558 = vunpack.c.l.b16 %v1519
    %v1559 = vunpack.c.l.b16 %v1520
    %v1560 = vunpack.c.l.b16 %v1521
    %v1561 = vunpack.c.l.b16 %v1522
    %v1562 = vunpack.c.l.b16 %v1523
    %v1563 = vunpack.c.l.b16 %v1524
    %v1564 = vunpack.c.l.b16 %v1525
    %v1565 = vunpack.c.l.b16 %v1526
    %v1566 = vunpack.c.l.b16 %v1527
    %v1567 = vunpack.c.l.b16 %v1528
    %v1568 = vunpack.c.l.b16 %v1529
    %v1569 = vunpack.c.l.b16 %v1530
    %v1570 = vunpack.c.l.b16 %v1531
    %v1571 = vunpack.c.l.b16 %v1532
    %v1572 = vunpack.c.l.b16 %v1533
    %v1573 = vunpack.c.l.b16 %v1534
    %v1574 = vpack.c.b16 %v1559, %v1558
    %v1575 = vpack.c.b16 %v1561, %v1560
    %v1576 = vpack.c.b16 %v1563, %v1562
    %v1577 = vpack.c.b16 %v1565, %v1564
    %v1578 = vpack.c.b16 %v1567, %v1566
    %v1579 = vpack.c.b16 %v1569, %v1568
    %v1580 = vpack.c.b16 %v1571, %v1570
    %v1581 = vpack.c.b16 %v1573, %v1572
    %1590 = vmatprep.subr.bf16.mxu0 0
    %1591 = vmatpush1.bf16.msra.mxu0 %v1581
    %1592 = vmatprep.subr.bf16.mxu0 0
    %1593 = vmatpush1.bf16.msra.mxu0 %v1580
    %1594 = vmatprep.subr.bf16.mxu0 0
    %1595 = vmatpush1.bf16.msra.mxu0 %v1579
    %1596 = vmatprep.subr.bf16.mxu0 0
    %1597 = vmatpush1.bf16.msra.mxu0 %v1578
    %1598 = vmatprep.subr.bf16.mxu0 0
    %1599 = vmatpush1.bf16.msra.mxu0 %v1577
    %1600 = vmatprep.subr.bf16.mxu0 0
    %1601 = vmatpush1.bf16.msra.mxu0 %v1576
    %1602 = vmatprep.subr.bf16.mxu0 0
    %1603 = vmatpush1.bf16.msra.mxu0 %v1575
    %1604 = vmatprep.subr.bf16.mxu0 0
    %1605 = vmatpush1.bf16.msra.mxu0 %v1574
    %1606 = vmatprep.subr.bf16.mxu0 0
    %1607 = vmatpush2.bf16.msra.mxu0 0
    %1608 = vmatprep.subr.bf16.mxu0 0
    %1609 = vmatpush2.bf16.msra.mxu0 0
    %1610 = vmatprep.subr.bf16.mxu0 0
    %1611 = vmatpush2.bf16.msra.mxu0 0
    %1612 = vmatprep.subr.bf16.mxu0 0
    %1613 = vmatpush2.bf16.msra.mxu0 0
    %1614 = vmatprep.subr.bf16.mxu0 0
    %1615 = vmatpush2.bf16.msra.mxu0 0
    %1616 = vmatprep.subr.bf16.mxu0 0
    %1617 = vmatpush2.bf16.msra.mxu0 0
    %1618 = vmatprep.subr.bf16.mxu0 0
    %1619 = vmatpush2.bf16.msra.mxu0 0
    %1620 = vmatprep.subr.bf16.mxu0 0
    %1621 = vmatpush2.bf16.msra.mxu0 0
    %1622 = vmatprep.mubr.bf16.mxu0 0
    %1623 = vmatmul.mubr.bf16.gmra.mxu0 %v1518
    %v1624 = vpop.f32.mrf.mxu0
    %v1625 = vadd.f32 %v1540, %v1624
    %v1626 = vpop.f32.mrf.mxu0
    %v1627 = vpop.f32.mrf.mxu0
    %v1628 = vpop.f32.mrf.mxu0
    %1629 = vdwg.mxu0
    %v1630 = vlaneseq
    %v1631 = vand.u32 %v1630, 127
    %vm1632 = vcmp.lt.s32.totalorder %v1631, 5
    %v1633 = vsel %vm1632, %v1625, -1e+30
    %1634 = vmax.xlane.f32.xlu0 %v1633
    %v1635 = vpop.xlane.xlu0 %1634
    %v1636 = vsub.f32 %v1633, %v1635
    %v1637 = vmul.f32 %v1636, 1.442695
    %v1638 = vpow.pop %v1637
    %1639 = vadd.xlane.f32.xlu0 %v1638
    %v1640 = vpop.xlane.xlu0 %1639
    %v1641 = vlog2.pop %v1640
    %v1642 = vmul.f32 %v1641, 0.6931472
    %v1643 = vadd.f32 %v1635, %v1642
    %v1644 = vsub.f32 %v1633, %v1643
    %1645 = vst [vmem:[#allocation12] sm:$0xff] %v1644
    // Predicated region
    $region42: #{tpu_custom_call.1} parent=1 // pred_check
      _
    $region43: #{tpu_custom_call.1} parent=1 // pred_check_branch
      %1647 = sbr.rel (0) target = $region45
    $region44: #{tpu_custom_call.1} parent=1 // pred_region
      %s1649 = ssub.s32 128, 128
      %1650 = vsyncadd [#allocation6], %s1649
      %s1652 = sshll.u32 [#allocation12], 4
      %s1653 = int_to_ptr.vmem [resolvable:$true] %s1652
      %1655 = dma.vmem_to_hbm [thread:$0]  %s1653, 128, %s6, [#allocation6]
    $region45: #{tpu_custom_call.1} parent=1 // pred_fallthru
      _
    // Predicated region
    $region46: #{tpu_custom_call.1} parent=1 // pred_check
      _
    $region47: #{tpu_custom_call.1} parent=1 // pred_check_branch
      %1657 = sbr.rel (0) target = $region49
    $region48: #{tpu_custom_call.1} parent=1 // pred_region
      %1658 = dma.done [#allocation6], 128
    $region49: #{tpu_custom_call.1} parent=1 // pred_fallthru
      _
    %1659 = vsyncpa [#allocation5], 1
    %1660 = vsyncpa [#allocation8], 1
    %1661 = vsyncpa [#allocation11], 1
    %1662 = vsyncpa [#allocation6], 1

</llo_original>
